<compile_context>
chip_gen: v6e
topology: v6e:2x2x1
jax: 0.10.0
libtpu: 0.0.40
codegen_flags: <defaults>
</compile_context>

<pallas_src>
import numpy as np
import jax
import jax.numpy as jnp
from jax.experimental import pallas as pl
from jax.experimental.pallas import tpu as pltpu

_VMEM_LIMIT = 32 * 1024 * 1024  # safe under v7x's 64 MiB physical VMEM


# -----------------------------------------------------------------------------
# Kernel A: fused 3x3 conv (single matmul over im2col) + per-block BN partials
#   layout: (Cout, spatial) slabs -> spatial on lanes (lane-dense stores).
# -----------------------------------------------------------------------------
def _conv_stats_kernel(w_ref, b_ref, x_ref, y_ref, s_ref, q_ref):
    # w_ref: (Cout, Kp)   b_ref: (Cout, 1)   x_ref: (Kp, TS) im2col block
    # y_ref: (Cout, TS)   s_ref, q_ref: (Cout, 1) partial sum / sum-of-squares
    y = jnp.dot(w_ref[...], x_ref[...], preferred_element_type=jnp.float32)
    y = y + b_ref[...]                                   # lane-broadcast bias
    y_ref[...] = y
    s_ref[...] = jnp.sum(y, axis=1, keepdims=True)       # partial BN stats
    q_ref[...] = jnp.sum(y * y, axis=1, keepdims=True)


# -----------------------------------------------------------------------------
# Kernel B: BN affine -> separable bilinear x2 (two batched matmuls) -> ReLU
#           -> + skip.  One batch image per grid step, output written in NCHW.
# -----------------------------------------------------------------------------
def _bn_upsample_add_kernel(y_ref, sc_ref, sh_ref, uwt_ref, uh_ref,
                            x2_ref, o_ref):
    # y_ref: (Cout, H, W)    sc_ref/sh_ref: (Cout, 1, 1)
    # uwt_ref: (Cout, W, Wo) uh_ref: (Cout, Ho, H)
    # x2_ref / o_ref: (Cout, Ho, Wo)
    y = y_ref[...] * sc_ref[...] + sh_ref[...]                       # BN affine
    t = jnp.einsum("chw,cwq->chq", y, uwt_ref[...],
                   preferred_element_type=jnp.float32)               # W-upsample
    u = jnp.einsum("cph,chq->cpq", uh_ref[...], t,
                   preferred_element_type=jnp.float32)               # H-upsample
    o_ref[...] = jnp.maximum(u, 0.0) + x2_ref[...]                   # ReLU + add


# -----------------------------------------------------------------------------
# host-side glue
# -----------------------------------------------------------------------------
def _upsample_matrix(size_in: int) -> np.ndarray:
    """Row-stochastic matrix for PyTorch bilinear x2, align_corners=False."""
    size_out = 2 * size_in
    dst = np.arange(size_out)
    src = (dst + 0.5) / 2.0 - 0.5
    src = np.maximum(src, 0.0)                 # PyTorch clamps negative src
    i0 = np.floor(src).astype(np.int64)
    i0 = np.minimum(i0, size_in - 1)
    lam = src - i0
    i1 = np.minimum(i0 + 1, size_in - 1)
    u = np.zeros((size_out, size_in), np.float32)
    u[dst, i0] += (1.0 - lam).astype(np.float32)
    u[dst, i1] += lam.astype(np.float32)
    return u


def _pick_spatial_tile(ns: int) -> int:
    """Largest lane tile <= 2048 that divides ns and leaves >=2 grid steps."""
    for ts in (2048, 1024, 512, 256, 128):
        if ns % ts == 0 and ns // ts >= 2:
            return ts
    return ns


def decoder_forward(x1, x2, w, b, gamma, beta):
    """x1: (N, Cin, H, W), x2: (N, Cout, 2H, 2W)  ->  (N, Cout, 2H, 2W) NCHW."""
    N, Cin, H, W = x1.shape
    Cout = w.shape[0]
    Ho, Wo = 2 * H, 2 * W
    assert x2.shape == (N, Cout, Ho, Wo)

    NS = N * H * W
    K9 = 9 * Cin
    K9p = ((K9 + 7) // 8) * 8                      # pad contraction dim to 8

    # ---- im2col (K, N*H*W): row = ci*9 + dy*3 + dx, col = n*H*W + h*W + w ----
    xpad = jnp.pad(x1.astype(jnp.float32), ((0, 0), (0, 0), (1, 1), (1, 1)))
    taps = [xpad[:, :, dy:dy + H, dx:dx + W] for dy in range(3) for dx in range(3)]
    patches = jnp.stack(taps, axis=2)                       # (N, Cin, 9, H, W)
    im2col = patches.transpose(1, 2, 0, 3, 4).reshape(K9, NS)
    wmat = w.reshape(Cout, K9).astype(jnp.float32)
    if K9p != K9:
        im2col = jnp.pad(im2col, ((0, K9p - K9), (0, 0)))
        wmat = jnp.pad(wmat, ((0, 0), (0, K9p - K9)))
    bias2 = b.reshape(Cout, 1).astype(jnp.float32)

    TS = _pick_spatial_tile(NS)
    G = NS // TS

    # ---- Kernel A: conv-as-one-matmul + per-block BN partial stats -----------
    y_flat, psum, psumsq = pl.pallas_call(
        _conv_stats_kernel,
        out_shape=(
            jax.ShapeDtypeStruct((Cout, NS), jnp.float32),
            jax.ShapeDtypeStruct((G, Cout, 1), jnp.float32),
            jax.ShapeDtypeStruct((G, Cout, 1), jnp.float32),
        ),
        grid_spec=pltpu.PrefetchScalarGridSpec(
            num_scalar_prefetch=0,
            grid=(G,),
            in_specs=[
                pl.BlockSpec((Cout, K9p), lambda i: (0, 0)),
                pl.BlockSpec((Cout, 1), lambda i: (0, 0)),
                pl.BlockSpec((K9p, TS), lambda i: (0, i)),
            ],
            out_specs=(
                pl.BlockSpec((Cout, TS), lambda i: (0, i)),
                pl.BlockSpec((None, Cout, 1), lambda i: (i, 0, 0)),
                pl.BlockSpec((None, Cout, 1), lambda i: (i, 0, 0)),
            ),
        ),
        compiler_params=pltpu.CompilerParams(
            dimension_semantics=("parallel",),
            vmem_limit_bytes=_VMEM_LIMIT,
        ),
        cost_estimate=pl.CostEstimate(
            flops=2 * Cout * K9p * NS + 4 * Cout * NS,
            transcendentals=0,
            bytes_accessed=4 * (K9p * NS + Cout * NS + Cout * K9p
                                + Cout * (2 * G + 1)),
        ),
    )(wmat, bias2, im2col)

    # ---- global BN stats (tiny, host-side): biased var, eps=1e-5 -------------
    total = jnp.sum(psum, axis=0)                    # (Cout, 1)
    total_sq = jnp.sum(psumsq, axis=0)               # (Cout, 1)
    mean = total / NS
    var = jnp.maximum(total_sq / NS - mean * mean, 0.0)
    inv_std = jax.lax.rsqrt(var + 1e-5)
    scale = gamma.reshape(Cout, 1).astype(jnp.float32) * inv_std
    shift = beta.reshape(Cout, 1).astype(jnp.float32) - mean * scale
    scale3 = scale.reshape(Cout, 1, 1)
    shift3 = shift.reshape(Cout, 1, 1)

    # ---- separable bilinear operators (broadcast once over channels) ---------
    uh = _upsample_matrix(H)                         # (Ho, H)
    uw = _upsample_matrix(W)                         # (Wo, W)
    uh_b = jnp.broadcast_to(jnp.asarray(uh, jnp.float32), (Cout, Ho, H))
    uwt_b = jnp.broadcast_to(jnp.asarray(uw.T, jnp.float32), (Cout, W, Wo))

    y4 = y_flat.reshape(Cout, N, H, W)               # channel-major conv output

    # ---- Kernel B: BN affine + separable upsample + ReLU + skip add ----------
    out = pl.pallas_call(
        _bn_upsample_add_kernel,
        out_shape=jax.ShapeDtypeStruct((N, Cout, Ho, Wo), jnp.float32),
        grid_spec=pltpu.PrefetchScalarGridSpec(
            num_scalar_prefetch=0,
            grid=(N,),
            in_specs=[
                pl.BlockSpec((Cout, None, H, W), lambda n: (0, n, 0, 0)),
                pl.BlockSpec((Cout, 1, 1), lambda n: (0, 0, 0)),
                pl.BlockSpec((Cout, 1, 1), lambda n: (0, 0, 0)),
                pl.BlockSpec((Cout, W, Wo), lambda n: (0, 0, 0)),
                pl.BlockSpec((Cout, Ho, H), lambda n: (0, 0, 0)),
                pl.BlockSpec((None, Cout, Ho, Wo), lambda n: (n, 0, 0, 0)),
            ],
            out_specs=pl.BlockSpec((None, Cout, Ho, Wo),
                                   lambda n: (n, 0, 0, 0)),
        ),
        compiler_params=pltpu.CompilerParams(
            dimension_semantics=("parallel",),
            vmem_limit_bytes=_VMEM_LIMIT,
        ),
        cost_estimate=pl.CostEstimate(
            flops=N * Cout * (2 * H * W * Wo + 2 * H * Ho * Wo + 4 * Ho * Wo),
            transcendentals=0,
            bytes_accessed=4 * (Cout * NS + 2 * N * Cout * Ho * Wo
                                + Cout * (W * Wo + Ho * H) + 2 * Cout),
        ),
    )(y4, scale3, shift3, uwt_b, uh_b, x2.astype(jnp.float32))

    return out                                        # already NCHW


# -----------------------------------------------------------------------------
# pure-JAX reference (sanity check only)
# -----------------------------------------------------------------------------
def decoder_reference(x1, x2, w, b, gamma, beta):
    N, Cin, H, W = x1.shape
    Cout = w.shape[0]
    y = jax.lax.conv_general_dilated(
        x1, w, window_strides=(1, 1), padding="SAME",
        dimension_numbers=("NCHW", "OIHW", "NCHW"))
    y = y + b[None, :, None, None]
    mean = jnp.mean(y, axis=(0, 2, 3), keepdims=True)
    var = jnp.mean((y - mean) ** 2, axis=(0, 2, 3), keepdims=True)
    y = (y - mean) * jax.lax.rsqrt(var + 1e-5)
    y = y * gamma[None, :, None, None] + beta[None, :, None, None]
    uh = jnp.asarray(_upsample_matrix(H))
    uw = jnp.asarray(_upsample_matrix(W))
    y = jnp.einsum("ph,nchw->ncpw", uh, y)
    y = jnp.einsum("qw,ncpw->ncpq", uw, y)
    y = jnp.maximum(y, 0.0)
    return y + x2


# -----------------------------------------------------------------------------
if __name__ == "__main__":
    N, Cin, Cout, H, W = 2, 4, 8, 16, 16

    key = jax.random.PRNGKey(0)
    k1, k2, k3, k4, k5, k6 = jax.random.split(key, 6)
    x1 = jax.random.normal(k1, (N, Cin, H, W), jnp.float32)
    x2 = jax.random.normal(k2, (N, Cout, 2 * H, 2 * W), jnp.float32)

    # deterministic synthetic parameters (shapes from nn.Conv2d / nn.BatchNorm2d)
    w = 0.1 * jax.random.normal(k3, (Cout, Cin, 3, 3), jnp.float32)
    b = 0.1 * jax.random.normal(k4, (Cout,), jnp.float32)
    gamma = 1.0 + 0.1 * jax.random.normal(k5, (Cout,), jnp.float32)
    beta = 0.1 * jax.random.normal(k6, (Cout,), jnp.float32)

    fwd = jax.jit(decoder_forward)
    out = jax.block_until_ready(fwd(x1, x2, w, b, gamma, beta))

    ref = jax.block_until_ready(decoder_reference(x1, x2, w, b, gamma, beta))
    assert out.shape == (N, Cout, 2 * H, 2 * W), out.shape
    if not np.allclose(np.asarray(out), np.asarray(ref), rtol=1e-3, atol=2e-3):
        raise AssertionError("kernel output mismatch vs reference")

    print("KERNEL_OK")
</pallas_src>

<mosaic_0001>
module attributes {stable_mosaic.version = 11 : i64} {
  func.func @_conv_stats_kernel(%arg0: i32, %arg1: memref<8x40xf32, #tpu.memory_space<vmem>>, %arg2: memref<8x1xf32, #tpu.memory_space<vmem>>, %arg3: memref<40x256xf32, #tpu.memory_space<vmem>>, %arg4: memref<8x256xf32, #tpu.memory_space<vmem>>, %arg5: memref<1x8x1xf32, #tpu.memory_space<vmem>>, %arg6: memref<1x8x1xf32, #tpu.memory_space<vmem>>) attributes {dimension_semantics = [#tpu.dimension_semantics<parallel>], iteration_bounds = array<i64: 2>, scalar_prefetch = 0 : i64, scratch_operands = 0 : i64, tpu.core_type = #tpu.core_type<tc>, window_params = [{pipeline_mode = #tpu.pipeline_mode<synchronous>, transform_indices = @transform_0, window_bounds = array<i64: 8, 40>}, {pipeline_mode = #tpu.pipeline_mode<synchronous>, transform_indices = @transform_1, window_bounds = array<i64: 8, 1>}, {transform_indices = @transform_2, window_bounds = array<i64: 40, 256>}, {transform_indices = @transform_3, window_bounds = array<i64: 8, 256>}, {transform_indices = @transform_4, window_bounds = array<i64: 1, 8, 1>}, {transform_indices = @transform_5, window_bounds = array<i64: 1, 8, 1>}]} {
    %c0 = arith.constant 0 : index
    %c0_0 = arith.constant 0 : index
    %0 = vector.load %arg1[%c0, %c0_0] : memref<8x40xf32, #tpu.memory_space<vmem>>, vector<8x40xf32>
    %c0_1 = arith.constant 0 : index
    %c0_2 = arith.constant 0 : index
    %1 = vector.load %arg3[%c0_1, %c0_2] : memref<40x256xf32, #tpu.memory_space<vmem>>, vector<40x256xf32>
    %cst = arith.constant dense<0.000000e+00> : vector<8x256xf32>
    %2 = tpu.matmul %0, %1, %cst {dimension_numbers = #tpu.dot_dimension_numbers<[1], [0], [0], [1], [0, 0, 1, 1], [], []>} : vector<8x40xf32>, vector<40x256xf32>, vector<8x256xf32> -> vector<8x256xf32>
    %c0_3 = arith.constant 0 : index
    %c0_4 = arith.constant 0 : index
    %3 = vector.load %arg2[%c0_3, %c0_4] : memref<8x1xf32, #tpu.memory_space<vmem>>, vector<8x1xf32>
    %4 = vector.broadcast %3 : vector<8x1xf32> to vector<8x256xf32>
    %5 = arith.addf %2, %4 : vector<8x256xf32>
    %c0_5 = arith.constant 0 : index
    %c0_6 = arith.constant 0 : index
    %6 = vector.load %arg4[%c0_5, %c0_6] : memref<8x256xf32, #tpu.memory_space<vmem>>, vector<8x256xf32>
    tpu.vector_store %arg4[%c0_5, %c0_6], %5 {strides = array<i32>} : memref<8x256xf32, #tpu.memory_space<vmem>>, vector<8x256xf32>,
    %cst_7 = arith.constant dense<0.000000e+00> : vector<8xf32>
    %7 = vector.multi_reduction <add>, %5, %cst_7 [1] : vector<8x256xf32> to vector<8xf32>
    %8 = vector.shape_cast %7 : vector<8xf32> to vector<8x1xf32>
    %c0_8 = arith.constant 0 : index
    %c0_9 = arith.constant 0 : index
    %c0_10 = arith.constant 0 : index
    %9 = vector.load %arg5[%c0_8, %c0_9, %c0_10] : memref<1x8x1xf32, #tpu.memory_space<vmem>>, vector<1x8x1xf32>
    %10 = vector.shape_cast %9 : vector<1x8x1xf32> to vector<8x1xf32>
    %11 = vector.shape_cast %8 : vector<8x1xf32> to vector<1x8x1xf32>
    tpu.vector_store %arg5[%c0_8, %c0_9, %c0_10], %11 {strides = array<i32>} : memref<1x8x1xf32, #tpu.memory_space<vmem>>, vector<1x8x1xf32>,
    %12 = arith.mulf %5, %5 : vector<8x256xf32>
    %cst_11 = arith.constant dense<0.000000e+00> : vector<8xf32>
    %13 = vector.multi_reduction <add>, %12, %cst_11 [1] : vector<8x256xf32> to vector<8xf32>
    %14 = vector.shape_cast %13 : vector<8xf32> to vector<8x1xf32>
    %c0_12 = arith.constant 0 : index
    %c0_13 = arith.constant 0 : index
    %c0_14 = arith.constant 0 : index
    %15 = vector.load %arg6[%c0_12, %c0_13, %c0_14] : memref<1x8x1xf32, #tpu.memory_space<vmem>>, vector<1x8x1xf32>
    %16 = vector.shape_cast %15 : vector<1x8x1xf32> to vector<8x1xf32>
    %17 = vector.shape_cast %14 : vector<8x1xf32> to vector<1x8x1xf32>
    tpu.vector_store %arg6[%c0_12, %c0_13, %c0_14], %17 {strides = array<i32>} : memref<1x8x1xf32, #tpu.memory_space<vmem>>, vector<1x8x1xf32>,
    return
  }
  func.func @transform_0(%arg0: i32) -> (i32, i32) {
    %c0_i32 = arith.constant 0 : i32
    %c0_i32_0 = arith.constant 0 : i32
    %c0_i32_1 = arith.constant 0 : i32
    return %c0_i32, %c0_i32_0 : i32, i32
  }
  func.func @transform_1(%arg0: i32) -> (i32, i32) {
    %c0_i32 = arith.constant 0 : i32
    %c0_i32_0 = arith.constant 0 : i32
    %c0_i32_1 = arith.constant 0 : i32
    return %c0_i32, %c0_i32_0 : i32, i32
  }
  func.func @transform_2(%arg0: i32) -> (i32, i32) {
    %c0_i32 = arith.constant 0 : i32
    %c0_i32_0 = arith.constant 0 : i32
    return %c0_i32, %arg0 : i32, i32
  }
  func.func @transform_3(%arg0: i32) -> (i32, i32) {
    %c0_i32 = arith.constant 0 : i32
    %c0_i32_0 = arith.constant 0 : i32
    return %c0_i32, %arg0 : i32, i32
  }
  func.func @transform_4(%arg0: i32) -> (i32, i32, i32) {
    %c0_i32 = arith.constant 0 : i32
    %c0_i32_0 = arith.constant 0 : i32
    %c0_i32_1 = arith.constant 0 : i32
    return %arg0, %c0_i32, %c0_i32_0 : i32, i32, i32
  }
  func.func @transform_5(%arg0: i32) -> (i32, i32, i32) {
    %c0_i32 = arith.constant 0 : i32
    %c0_i32_0 = arith.constant 0 : i32
    %c0_i32_1 = arith.constant 0 : i32
    return %arg0, %c0_i32, %c0_i32_0 : i32, i32, i32
  }
}

module attributes {stable_mosaic.version = 11 : i64} {
  func.func @_bn_upsample_add_kernel(%arg0: i32, %arg1: memref<8x1x16x16xf32, #tpu.memory_space<vmem>>, %arg2: memref<8x1x1xf32, #tpu.memory_space<vmem>>, %arg3: memref<8x1x1xf32, #tpu.memory_space<vmem>>, %arg4: memref<8x16x32xf32, #tpu.memory_space<vmem>>, %arg5: memref<8x32x16xf32, #tpu.memory_space<vmem>>, %arg6: memref<1x8x32x32xf32, #tpu.memory_space<vmem>>, %arg7: memref<1x8x32x32xf32, #tpu.memory_space<vmem>>) attributes {dimension_semantics = [#tpu.dimension_semantics<parallel>], iteration_bounds = array<i64: 2>, scalar_prefetch = 0 : i64, scratch_operands = 0 : i64, tpu.core_type = #tpu.core_type<tc>, window_params = [{transform_indices = @transform_0, window_bounds = array<i64: 8, 1, 16, 16>}, {pipeline_mode = #tpu.pipeline_mode<synchronous>, transform_indices = @transform_1, window_bounds = array<i64: 8, 1, 1>}, {pipeline_mode = #tpu.pipeline_mode<synchronous>, transform_indices = @transform_2, window_bounds = array<i64: 8, 1, 1>}, {pipeline_mode = #tpu.pipeline_mode<synchronous>, transform_indices = @transform_3, window_bounds = array<i64: 8, 16, 32>}, {pipeline_mode = #tpu.pipeline_mode<synchronous>, transform_indices = @transform_4, window_bounds = array<i64: 8, 32, 16>}, {transform_indices = @transform_5, window_bounds = array<i64: 1, 8, 32, 32>}, {transform_indices = @transform_6, window_bounds = array<i64: 1, 8, 32, 32>}]} {
    %c0 = arith.constant 0 : index
    %c0_0 = arith.constant 0 : index
    %c0_1 = arith.constant 0 : index
    %c0_2 = arith.constant 0 : index
    %0 = vector.load %arg1[%c0, %c0_0, %c0_1, %c0_2] : memref<8x1x16x16xf32, #tpu.memory_space<vmem>>, vector<8x1x16x16xf32>
    %1 = vector.shape_cast %0 : vector<8x1x16x16xf32> to vector<8x16x16xf32>
    %c0_3 = arith.constant 0 : index
    %c0_4 = arith.constant 0 : index
    %c0_5 = arith.constant 0 : index
    %2 = vector.load %arg2[%c0_3, %c0_4, %c0_5] : memref<8x1x1xf32, #tpu.memory_space<vmem>>, vector<8x1x1xf32>
    %3 = vector.broadcast %2 : vector<8x1x1xf32> to vector<8x16x16xf32>
    %4 = arith.mulf %1, %3 : vector<8x16x16xf32>
    %c0_6 = arith.constant 0 : index
    %c0_7 = arith.constant 0 : index
    %c0_8 = arith.constant 0 : index
    %5 = vector.load %arg3[%c0_6, %c0_7, %c0_8] : memref<8x1x1xf32, #tpu.memory_space<vmem>>, vector<8x1x1xf32>
    %6 = vector.broadcast %5 : vector<8x1x1xf32> to vector<8x16x16xf32>
    %7 = arith.addf %4, %6 : vector<8x16x16xf32>
    %c0_9 = arith.constant 0 : index
    %c0_10 = arith.constant 0 : index
    %c0_11 = arith.constant 0 : index
    %8 = vector.load %arg4[%c0_9, %c0_10, %c0_11] : memref<8x16x32xf32, #tpu.memory_space<vmem>>, vector<8x16x32xf32>
    "tpu.trace_start"() <{level = 10 : i32, message = "chw,cwq->chq"}> : () -> ()
    %cst = arith.constant dense<0.000000e+00> : vector<8x16x32xf32>
    %9 = tpu.matmul %7, %8, %cst {dimension_numbers = #tpu.dot_dimension_numbers<[2], [1], [1], [2], [0, 0, 0, 1, 1, 2], [0], [0]>} : vector<8x16x16xf32>, vector<8x16x32xf32>, vector<8x16x32xf32> -> vector<8x16x32xf32>
    "tpu.trace_stop"() : () -> ()
    %c0_12 = arith.constant 0 : index
    %c0_13 = arith.constant 0 : index
    %c0_14 = arith.constant 0 : index
    %10 = vector.load %arg5[%c0_12, %c0_13, %c0_14] : memref<8x32x16xf32, #tpu.memory_space<vmem>>, vector<8x32x16xf32>
    "tpu.trace_start"() <{level = 10 : i32, message = "cph,chq->cpq"}> : () -> ()
    %cst_15 = arith.constant dense<0.000000e+00> : vector<8x32x32xf32>
    %11 = tpu.matmul %10, %9, %cst_15 {dimension_numbers = #tpu.dot_dimension_numbers<[2], [1], [1], [2], [0, 0, 0, 1, 1, 2], [0], [0]>} : vector<8x32x16xf32>, vector<8x16x32xf32>, vector<8x32x32xf32> -> vector<8x32x32xf32>
    "tpu.trace_stop"() : () -> ()
    %cst_16 = arith.constant 0.000000e+00 : f32
    %12 = vector.broadcast %cst_16 : f32 to vector<8x32x32xf32>
    %13 = arith.maximumf %11, %12 : vector<8x32x32xf32>
    %c0_17 = arith.constant 0 : index
    %c0_18 = arith.constant 0 : index
    %c0_19 = arith.constant 0 : index
    %c0_20 = arith.constant 0 : index
    %14 = vector.load %arg6[%c0_17, %c0_18, %c0_19, %c0_20] : memref<1x8x32x32xf32, #tpu.memory_space<vmem>>, vector<1x8x32x32xf32>
    %15 = vector.shape_cast %14 : vector<1x8x32x32xf32> to vector<8x32x32xf32>
    %16 = arith.addf %13, %15 : vector<8x32x32xf32>
    %c0_21 = arith.constant 0 : index
    %c0_22 = arith.constant 0 : index
    %c0_23 = arith.constant 0 : index
    %c0_24 = arith.constant 0 : index
    %17 = vector.load %arg7[%c0_21, %c0_22, %c0_23, %c0_24] : memref<1x8x32x32xf32, #tpu.memory_space<vmem>>, vector<1x8x32x32xf32>
    %18 = vector.shape_cast %17 : vector<1x8x32x32xf32> to vector<8x32x32xf32>
    %19 = vector.shape_cast %16 : vector<8x32x32xf32> to vector<1x8x32x32xf32>
    tpu.vector_store %arg7[%c0_21, %c0_22, %c0_23, %c0_24], %19 {strides = array<i32>} : memref<1x8x32x32xf32, #tpu.memory_space<vmem>>, vector<1x8x32x32xf32>,
    return
  }
  func.func @transform_0(%arg0: i32) -> (i32, i32, i32, i32) {
    %c0_i32 = arith.constant 0 : i32
    %c0_i32_0 = arith.constant 0 : i32
    %c0_i32_1 = arith.constant 0 : i32
    %c0_i32_2 = arith.constant 0 : i32
    return %c0_i32, %arg0, %c0_i32_0, %c0_i32_1 : i32, i32, i32, i32
  }
  func.func @transform_1(%arg0: i32) -> (i32, i32, i32) {
    %c0_i32 = arith.constant 0 : i32
    %c0_i32_0 = arith.constant 0 : i32
    %c0_i32_1 = arith.constant 0 : i32
    %c0_i32_2 = arith.constant 0 : i32
    return %c0_i32, %c0_i32_0, %c0_i32_1 : i32, i32, i32
  }
  func.func @transform_2(%arg0: i32) -> (i32, i32, i32) {
    %c0_i32 = arith.constant 0 : i32
    %c0_i32_0 = arith.constant 0 : i32
    %c0_i32_1 = arith.constant 0 : i32
    %c0_i32_2 = arith.constant 0 : i32
    return %c0_i32, %c0_i32_0, %c0_i32_1 : i32, i32, i32
  }
  func.func @transform_3(%arg0: i32) -> (i32, i32, i32) {
    %c0_i32 = arith.constant 0 : i32
    %c0_i32_0 = arith.constant 0 : i32
    %c0_i32_1 = arith.constant 0 : i32
    %c0_i32_2 = arith.constant 0 : i32
    return %c0_i32, %c0_i32_0, %c0_i32_1 : i32, i32, i32
  }
  func.func @transform_4(%arg0: i32) -> (i32, i32, i32) {
    %c0_i32 = arith.constant 0 : i32
    %c0_i32_0 = arith.constant 0 : i32
    %c0_i32_1 = arith.constant 0 : i32
    %c0_i32_2 = arith.constant 0 : i32
    return %c0_i32, %c0_i32_0, %c0_i32_1 : i32, i32, i32
  }
  func.func @transform_5(%arg0: i32) -> (i32, i32, i32, i32) {
    %c0_i32 = arith.constant 0 : i32
    %c0_i32_0 = arith.constant 0 : i32
    %c0_i32_1 = arith.constant 0 : i32
    %c0_i32_2 = arith.constant 0 : i32
    return %arg0, %c0_i32, %c0_i32_0, %c0_i32_1 : i32, i32, i32, i32
  }
  func.func @transform_6(%arg0: i32) -> (i32, i32, i32, i32) {
    %c0_i32 = arith.constant 0 : i32
    %c0_i32_0 = arith.constant 0 : i32
    %c0_i32_1 = arith.constant 0 : i32
    %c0_i32_2 = arith.constant 0 : i32
    return %arg0, %c0_i32, %c0_i32_0, %c0_i32_1 : i32, i32, i32, i32
  }
}

</mosaic_0001>

<llo_original>
// kernel: decoder_forward.2
$region0: #{decoder_forward.2}
  #allocation0 [shape = 'u32[]', space=smem, size = 0x4, offset = 0x4, fixed_abs, tag = 'smem constant byte address 0x4 - core index']
  #allocation1 [shape = 'u32[144,128]{1,0:T(1,128)}', space=vmem, size = 0x12000, scoped, tag = 'internal scratch']
  %s0 = inlined_call_operand.vmem [shape: f32[8,40], index: 0, kind: input, shape index: {}]
  %s1 = inlined_call_operand.vmem [shape: f32[8,1], index: 1, kind: input, shape index: {}]
  %s2 = inlined_call_operand.vmem [shape: f32[40,512], index: 2, kind: input, shape index: {}]
  %s3 = inlined_call_operand.vmem [shape: f32[8,512], index: 3, kind: output, shape index: {0}]
  %s4 = inlined_call_operand.vmem [shape: f32[2,8,1], index: 4, kind: output, shape index: {1}]
  %s5 = inlined_call_operand.vmem [shape: f32[2,8,1], index: 5, kind: output, shape index: {2}]
  %6 = xla_tuple %s3, %s4, %s5
  %s7 = sld [smem:[#allocation0]]
  $region84: #{decoder_forward.2} parent=0
    _
  %s9 = ssub.s32 1, %s7
  %s10 = scalar_select 0, %s9, %s7
  $region1: #{decoder_forward.2} parent=0
    #allocation2 [shape = 'u8[81920]{0}', space=vmem, size = 0x14000, scoped, tag = 'input window, operand 2']
    loop: start=0, step=1, limit=4
    $region2: #{decoder_forward.2} parent=1 // loop_pre_header
      _
    $region3: #{decoder_forward.2} parent=1 // loop_header
      %s12 = sphi 0, %s16
      %p13 = scmp.ge.s32.totalorder %s12, 4
      %s20 = sphi 0, %s20
      %s22 = sphi 0, %s20
      %s23 = sphi 0, %s22
      %s37 = sphi 0, %s23
      %s41 = sphi 0, %s41
      %s43 = sphi 0, %s41
      %s44 = sphi 0, %s43
      %s58 = sphi 0, %s44
      %s64 = sphi 0, %s66
      %s67 = sphi 0, %s64
      %s68 = sphi 0, %s67
      %s84 = sphi 0, %s68
      %s90 = sphi 0, %s92
      %s93 = sphi 0, %s90
      %s94 = sphi 0, %s93
      %s110 = sphi 0, %s94
      %s116 = sphi 0, %s118
      %s119 = sphi 0, %s116
      %s120 = sphi 0, %s119
      %s136 = sphi 0, %s120
      %s142 = sphi 0, %s144
      %s145 = sphi 0, %s142
      %s146 = sphi 0, %s145
      %s162 = sphi 0, %s146
    $region4: #{decoder_forward.2} parent=1 // loop_header_branch
      %15 = sbr.rel (%p13) target = $region8
    $region5: #{decoder_forward.2} parent=1 // loop_body
      %s17 = ssub.s32 %s12, 1
      %s18 = ssub.s32 %s12, 2
      %s19 = sadd.s32 %s12, 1
      %s21 = sadd.s32 %s20, 1
      %p24 = scmp.eq.s32.totalorder %s12, 1
      %p25 = scmp.ne.s32.totalorder %s20, %s22
      %p26 = scmp.eq.s32.totalorder %s12, 0
      %p27 = por %p25, %p26
      %p28 = scmp.ne.s32.totalorder %s20, %s22
      %p29 = scmp.eq.s32.totalorder %s17, 1
      %p30 = por %p28, %p29
      %p31 = scmp.ne.s32.totalorder %s22, %s23
      %p32 = scmp.eq.s32.totalorder %s17, 0
      %p33 = por %p31, %p32
      %p34 = scmp.ne.s32.totalorder %s22, %s23
      %p35 = scmp.eq.s32.totalorder %s18, 1
      %p36 = por %p34, %p35
      %p38 = scmp.ne.s32.totalorder %s23, %s37
      %p39 = scmp.eq.s32.totalorder %s18, 0
      %p40 = por %p38, %p39
      %s42 = sadd.s32 %s41, 1
      %p45 = scmp.eq.s32.totalorder %s12, 1
      %p46 = scmp.ne.s32.totalorder %s41, %s43
      %p47 = scmp.eq.s32.totalorder %s12, 0
      %p48 = por %p46, %p47
      %p49 = scmp.ne.s32.totalorder %s41, %s43
      %p50 = scmp.eq.s32.totalorder %s17, 1
      %p51 = por %p49, %p50
      %p52 = scmp.ne.s32.totalorder %s43, %s44
      %p53 = scmp.eq.s32.totalorder %s17, 0
      %p54 = por %p52, %p53
      %p55 = scmp.ne.s32.totalorder %s43, %s44
      %p56 = scmp.eq.s32.totalorder %s18, 1
      %p57 = por %p55, %p56
      %p59 = scmp.ne.s32.totalorder %s44, %s58
      %p60 = scmp.eq.s32.totalorder %s18, 0
      %p61 = por %p59, %p60
      %s62 = ssub.s32 %s12, %s19
      %p63 = scmp.eq.s32.totalorder %s62, 0
      %s65 = sadd.s32 %s64, 1
      %s66 = scalar_select %p63, %s64, %s65
      %p69 = pneg %p63
      %p70 = scmp.eq.s32.totalorder %s12, 1
      %p71 = por %p69, %p70
      %p72 = scmp.ne.s32.totalorder %s64, %s67
      %p73 = scmp.eq.s32.totalorder %s12, 0
      %p74 = por %p72, %p73
      %p75 = scmp.ne.s32.totalorder %s64, %s67
      %p76 = scmp.eq.s32.totalorder %s17, 1
      %p77 = por %p75, %p76
      %p78 = scmp.ne.s32.totalorder %s67, %s68
      %p79 = scmp.eq.s32.totalorder %s17, 0
      %p80 = por %p78, %p79
      %p81 = scmp.ne.s32.totalorder %s67, %s68
      %p82 = scmp.eq.s32.totalorder %s18, 1
      %p83 = por %p81, %p82
      %p85 = scmp.ne.s32.totalorder %s68, %s84
      %p86 = scmp.eq.s32.totalorder %s18, 0
      %p87 = por %p85, %p86
      %s88 = ssub.s32 %s12, %s19
      %p89 = scmp.eq.s32.totalorder %s88, 0
      %s91 = sadd.s32 %s90, 1
      %s92 = scalar_select %p89, %s90, %s91
      %p95 = pneg %p89
      %p96 = scmp.eq.s32.totalorder %s12, 1
      %p97 = por %p95, %p96
      %p98 = scmp.ne.s32.totalorder %s90, %s93
      %p99 = scmp.eq.s32.totalorder %s12, 0
      %p100 = por %p98, %p99
      %p101 = scmp.ne.s32.totalorder %s90, %s93
      %p102 = scmp.eq.s32.totalorder %s17, 1
      %p103 = por %p101, %p102
      %p104 = scmp.ne.s32.totalorder %s93, %s94
      %p105 = scmp.eq.s32.totalorder %s17, 0
      %p106 = por %p104, %p105
      %p107 = scmp.ne.s32.totalorder %s93, %s94
      %p108 = scmp.eq.s32.totalorder %s18, 1
      %p109 = por %p107, %p108
      %p111 = scmp.ne.s32.totalorder %s94, %s110
      %p112 = scmp.eq.s32.totalorder %s18, 0
      %p113 = por %p111, %p112
      %s114 = ssub.s32 %s12, %s19
      %p115 = scmp.eq.s32.totalorder %s114, 0
      %s117 = sadd.s32 %s116, 1
      %s118 = scalar_select %p115, %s116, %s117
      %p121 = pneg %p115
      %p122 = scmp.eq.s32.totalorder %s12, 1
      %p123 = por %p121, %p122
      %p124 = scmp.ne.s32.totalorder %s116, %s119
      %p125 = scmp.eq.s32.totalorder %s12, 0
      %p126 = por %p124, %p125
      %p127 = scmp.ne.s32.totalorder %s116, %s119
      %p128 = scmp.eq.s32.totalorder %s17, 1
      %p129 = por %p127, %p128
      %p130 = scmp.ne.s32.totalorder %s119, %s120
      %p131 = scmp.eq.s32.totalorder %s17, 0
      %p132 = por %p130, %p131
      %p133 = scmp.ne.s32.totalorder %s119, %s120
      %p134 = scmp.eq.s32.totalorder %s18, 1
      %p135 = por %p133, %p134
      %p137 = scmp.ne.s32.totalorder %s120, %s136
      %p138 = scmp.eq.s32.totalorder %s18, 0
      %p139 = por %p137, %p138
      %s140 = ssub.s32 %s12, %s19
      %p141 = scmp.eq.s32.totalorder %s140, 0
      %s143 = sadd.s32 %s142, 1
      %s144 = scalar_select %p141, %s142, %s143
      %p147 = pneg %p141
      %p148 = scmp.eq.s32.totalorder %s12, 1
      %p149 = por %p147, %p148
      %p150 = scmp.ne.s32.totalorder %s142, %s145
      %p151 = scmp.eq.s32.totalorder %s12, 0
      %p152 = por %p150, %p151
      %p153 = scmp.ne.s32.totalorder %s142, %s145
      %p154 = scmp.eq.s32.totalorder %s17, 1
      %p155 = por %p153, %p154
      %p156 = scmp.ne.s32.totalorder %s145, %s146
      %p157 = scmp.eq.s32.totalorder %s17, 0
      %p158 = por %p156, %p157
      %p159 = scmp.ne.s32.totalorder %s145, %s146
      %p160 = scmp.eq.s32.totalorder %s18, 1
      %p161 = por %p159, %p160
      %p163 = scmp.ne.s32.totalorder %s146, %s162
      %p164 = scmp.eq.s32.totalorder %s18, 0
      %p165 = por %p163, %p164
      %p166 = scmp.le.s32.totalorder 1, %s12
      %p167 = scmp.lt.s32.totalorder %s12, 3
      %p168 = pnand %p166, %p167
      %p169 = pneg %p168
      // Predicated region
      $region9: #{decoder_forward.2} parent=5 // pred_check
        _
      $region10: #{decoder_forward.2} parent=5 // pred_check_branch
        %171 = sbr.rel (%p168) target = $region12
      $region11: #{decoder_forward.2} parent=5 // pred_region
        %s172 = ssub.s32 %s12, 1
        // Predicated region
        $region13: #{decoder_forward.2} parent=11 // pred_check
          %p173 = pneg %p33
        $region14: #{decoder_forward.2} parent=11 // pred_check_branch
          %175 = sbr.rel (%p173) target = $region16
        $region15: #{decoder_forward.2} parent=11 // pred_region
          _
        $region16: #{decoder_forward.2} parent=11 // pred_fallthru
          _
        // Predicated region
        $region17: #{decoder_forward.2} parent=11 // pred_check
          %p176 = pneg %p54
        $region18: #{decoder_forward.2} parent=11 // pred_check_branch
          %178 = sbr.rel (%p176) target = $region20
        $region19: #{decoder_forward.2} parent=11 // pred_region
          _
        $region20: #{decoder_forward.2} parent=11 // pred_fallthru
          _
      $region12: #{decoder_forward.2} parent=5 // pred_fallthru
        _
      %p179 = scmp.lt.s32.totalorder %s12, 2
      // Predicated region
      $region21: #{decoder_forward.2} parent=5 // pred_check
        %p180 = pneg %p179
      $region22: #{decoder_forward.2} parent=5 // pred_check_branch
        %182 = sbr.rel (%p180) target = $region24
      $region23: #{decoder_forward.2} parent=5 // pred_region
        // Predicated region
        $region25: #{decoder_forward.2} parent=23 // pred_check
          %p183 = pneg %p74
        $region26: #{decoder_forward.2} parent=23 // pred_check_branch
          %185 = sbr.rel (%p183) target = $region28
        $region27: #{decoder_forward.2} parent=23 // pred_region
          %s186 = sand.u32 %s64, 1
          %s187 = sand.u32 %s64, 1
          %s188 = smul.addr %s187, 80
          %s189 = scalar_lea.vmem [#allocation2], %s188
          %s190 = smul.u32 2, %s12
          %s191 = smul.addr %s190, 8
          %s192 = scalar_lea.vmem %s2, %s191
          // Predicated region
          $region29: #{decoder_forward.2} parent=27 // pred_check
            _
          $region30: #{decoder_forward.2} parent=27 // pred_check_branch
            %194 = sbr.rel (0) target = $region32
          $region31: #{decoder_forward.2} parent=27 // pred_region
            // Predicated region
            $region33: #{decoder_forward.2} parent=31 // pred_check
              _
            $region34: #{decoder_forward.2} parent=31 // pred_check_branch
              %196 = sbr.rel (0) target = $region36
            $region35: #{decoder_forward.2} parent=31 // pred_region
              loop: start=0, step=1, limit=1
              $region37: #{decoder_forward.2} parent=35 // loop_pre_header
                _
              $region38: #{decoder_forward.2} parent=35 // loop_header
                %s198 = sphi 0, %s202
                %p199 = scmp.ge.s32.totalorder %s198, 1
                %s203 = sphi %s192, %s192
                %s204 = sphi %s189, %s189
              $region39: #{decoder_forward.2} parent=35 // loop_header_branch
                %201 = sbr.rel (%p199) target = $region43
              $region40: #{decoder_forward.2} parent=35 // loop_body
                %v205 = vld [vmem:[%s203] sm:$0xff]
                %206 = vst [vmem:[%s204] sm:$0xff] %v205
                %v207 = vld [vmem:[%s203 + $0x8] sm:$0xff]
                %208 = vst [vmem:[%s204 + $0x8] sm:$0xff] %v207
                %v209 = vld [vmem:[%s203 + $0x20] sm:$0xff]
                %210 = vst [vmem:[%s204 + $0x10] sm:$0xff] %v209
                %v211 = vld [vmem:[%s203 + $0x28] sm:$0xff]
                %212 = vst [vmem:[%s204 + $0x18] sm:$0xff] %v211
                %v213 = vld [vmem:[%s203 + $0x40] sm:$0xff]
                %214 = vst [vmem:[%s204 + $0x20] sm:$0xff] %v213
                %v215 = vld [vmem:[%s203 + $0x48] sm:$0xff]
                %216 = vst [vmem:[%s204 + $0x28] sm:$0xff] %v215
                %v217 = vld [vmem:[%s203 + $0x60] sm:$0xff]
                %218 = vst [vmem:[%s204 + $0x30] sm:$0xff] %v217
                %v219 = vld [vmem:[%s203 + $0x68] sm:$0xff]
                %220 = vst [vmem:[%s204 + $0x38] sm:$0xff] %v219
                %v221 = vld [vmem:[%s203 + $0x80] sm:$0xff]
                %222 = vst [vmem:[%s204 + $0x40] sm:$0xff] %v221
                %v223 = vld [vmem:[%s203 + $0x88] sm:$0xff]
                %224 = vst [vmem:[%s204 + $0x48] sm:$0xff] %v223
              $region41: #{decoder_forward.2} parent=35 // loop_footer
                %s202 = sadd.s32 1, %s198
              $region42: #{decoder_forward.2} parent=35 // loop_footer_branch
                %197 = sbr.rel target = $region38
              $region43: #{decoder_forward.2} parent=35 // loop_exit
                _
            $region36: #{decoder_forward.2} parent=31 // pred_fallthru
              _
            // Predicated region
            $region44: #{decoder_forward.2} parent=31 // pred_check
              _
            $region45: #{decoder_forward.2} parent=31 // pred_check_branch
              %226 = sbr.rel target = $region47
            $region46: #{decoder_forward.2} parent=31 // pred_region
              _
            $region47: #{decoder_forward.2} parent=31 // pred_fallthru
              _
          $region32: #{decoder_forward.2} parent=27 // pred_fallthru
            _
          %227 = vnop
        $region28: #{decoder_forward.2} parent=23 // pred_fallthru
          _
      $region24: #{decoder_forward.2} parent=5 // pred_fallthru
        _
      %p228 = scmp.le.s32.totalorder 1, %s12
      %p229 = scmp.lt.s32.totalorder %s12, 3
      %p230 = pnand %p228, %p229
      %p231 = pneg %p230
      // Predicated region
      $region48: #{decoder_forward.2} parent=5 // pred_check
        _
      $region49: #{decoder_forward.2} parent=5 // pred_check_branch
        %233 = sbr.rel (%p230) target = $region51
      $region50: #{decoder_forward.2} parent=5 // pred_region
        %s234 = ssub.s32 %s12, 1
        %s235 = sand.u32 %s67, 1
        %s236 = sand.u32 %s67, 1
        %s237 = smul.addr %s236, 80
        %s238 = scalar_lea.vmem [#allocation2], %s237
        // Predicated region
        $region52: #{decoder_forward.2} parent=50 // pred_check
          %p239 = pneg %p80
        $region53: #{decoder_forward.2} parent=50 // pred_check_branch
          %241 = sbr.rel (%p239) target = $region55
        $region54: #{decoder_forward.2} parent=50 // pred_region
          _
        $region55: #{decoder_forward.2} parent=50 // pred_fallthru
          _
        %p242 = pneg %p33
        %p243 = pneg %p30
        %p244 = pneg %p54
        %p245 = pneg %p51
        %s246 = sand.u32 %s67, 1
        %s247 = sand.u32 %s67, 1
        %s248 = smul.addr %s247, 80
        %s249 = scalar_lea.vmem [#allocation2], %s248
        %p250 = pneg %p80
        %p251 = pneg %p77
        %p252 = pneg %p106
        %p253 = pneg %p103
        %s254 = smul.u32 2, %s17
        %p255 = scmp.lt.s32.totalorder %s254, 3
        %s256 = scalar_select %p255, %s254, 3
        %s257 = smul.addr %s256, 8
        %s258 = scalar_lea.vmem %s3, %s257
        %p259 = pneg %p132
        %p260 = pneg %p129
        %p261 = scmp.lt.s32.totalorder %s17, 1
        %s262 = scalar_select %p261, %s17, 1
        %s263 = smul.addr %s262, 8
        %s264 = scalar_lea.vmem %s4, %s263
        %p265 = pneg %p158
        %p266 = pneg %p155
        %p267 = scmp.lt.s32.totalorder %s17, 1
        %s268 = scalar_select %p267, %s17, 1
        %s269 = smul.addr %s268, 8
        %s270 = scalar_lea.vmem %s5, %s269
        %s271 = smul.u32 2, %s17
        %s272 = smul.u32 2, %s17
        %p273 = scmp.lt.s32.totalorder %s272, 3
        %s274 = scalar_select %p273, %s272, 3
        %s275 = smul.addr %s274, 8
        %s276 = scalar_lea.vmem %s3, %s275
        %s277 = smul.u32 2, %s17
        %p278 = scmp.lt.s32.totalorder %s17, 1
        %s279 = scalar_select %p278, %s17, 1
        %s280 = smul.addr %s279, 8
        %s281 = scalar_lea.vmem %s4, %s280
        %p282 = scmp.lt.s32.totalorder %s17, 1
        %s283 = scalar_select %p282, %s17, 1
        %s284 = smul.addr %s283, 8
        %s285 = scalar_lea.vmem %s5, %s284
        %v286 = vld [vmem:[%s0] sm:$0xff]
        %v287 = vld [vmem:[%s238] sm:$0xff]
        %v288 = vld [vmem:[%s238 + $0x8] sm:$0xff]
        %v289 = vld [vmem:[%s238 + $0x10] sm:$0xff]
        %v290 = vld [vmem:[%s238 + $0x18] sm:$0xff]
        %v291 = vld [vmem:[%s238 + $0x20] sm:$0xff]
        %v292 = vld [vmem:[%s238 + $0x28] sm:$0xff]
        %v293 = vld [vmem:[%s238 + $0x30] sm:$0xff]
        %v294 = vld [vmem:[%s238 + $0x38] sm:$0xff]
        %v295 = vld [vmem:[%s238 + $0x40] sm:$0xff]
        %v296 = vld [vmem:[%s238 + $0x48] sm:$0xff]
        %v297 = vld [vmem:[%s1] sm:$0xff]
        %299 = vset.pattern.permute.xlu0 0
        %300 = vperm.xlu0 %299, %v297
        %v301 = vpop.permute.xlu0 %300
        %vm303 = vcmask 326656
        %v305 = vsel %vm303, %v286, 0
        %307 = vmatprep.subr.mxu0 0.0
        %308 = vmatpush1.msra.mxu0 0.0
        %309 = vmatprep.subr.mxu0 0.0
        %310 = vmatpush1.msra.mxu0 0.0
        %311 = vmatprep.subr.mxu0 0.0
        %312 = vmatpush1.msra.mxu0 0.0
        %313 = vmatprep.subr.mxu0 0.0
        %314 = vmatpush1.msra.mxu0 0.0
        %315 = vmatprep.subr.mxu0 0.0
        %316 = vmatpush1.msra.mxu0 0.0
        %317 = vmatprep.subr.mxu0 0.0
        %318 = vmatpush1.msra.mxu0 0.0
        %319 = vmatprep.subr.mxu0 0.0
        %320 = vmatpush1.msra.mxu0 0.0
        %321 = vmatprep.subr.mxu0 0.0
        %322 = vmatpush1.msra.mxu0 0.0
        %323 = vmatprep.subr.mxu0 0.0
        %324 = vmatpush1.msra.mxu0 0.0
        %325 = vmatprep.subr.mxu0 0.0
        %326 = vmatpush1.msra.mxu0 0.0
        %327 = vmatprep.subr.mxu0 0.0
        %328 = vmatpush1.msra.mxu0 0.0
        %329 = vmatprep.subr.mxu0 %v296
        %330 = vmatpush1.msra.mxu0 %v295
        %331 = vmatprep.subr.mxu0 %v294
        %332 = vmatpush1.msra.mxu0 %v293
        %333 = vmatprep.subr.mxu0 %v292
        %334 = vmatpush1.msra.mxu0 %v291
        %335 = vmatprep.subr.mxu0 %v290
        %336 = vmatpush1.msra.mxu0 %v289
        %337 = vmatprep.subr.mxu0 %v288
        %338 = vmatpush1.msra.mxu0 %v287
        %339 = vmatprep.subr.mxu0 0.0
        %340 = vmatpush2.msra.mxu0 0.0
        %341 = vmatprep.subr.mxu0 0.0
        %342 = vmatpush2.msra.mxu0 0.0
        %343 = vmatprep.subr.mxu0 0.0
        %344 = vmatpush2.msra.mxu0 0.0
        %345 = vmatprep.subr.mxu0 0.0
        %346 = vmatpush2.msra.mxu0 0.0
        %347 = vmatprep.subr.mxu0 0.0
        %348 = vmatpush2.msra.mxu0 0.0
        %349 = vmatprep.subr.mxu0 0.0
        %350 = vmatpush2.msra.mxu0 0.0
        %351 = vmatprep.subr.mxu0 0.0
        %352 = vmatpush2.msra.mxu0 0.0
        %353 = vmatprep.subr.mxu0 0.0
        %354 = vmatpush2.msra.mxu0 0.0
        %355 = vmatprep.subr.mxu0 0.0
        %356 = vmatpush2.msra.mxu0 0.0
        %357 = vmatprep.subr.mxu0 0.0
        %358 = vmatpush2.msra.mxu0 0.0
        %359 = vmatprep.subr.mxu0 0.0
        %360 = vmatpush2.msra.mxu0 0.0
        %361 = vmatprep.subr.mxu0 0.0
        %362 = vmatpush2.msra.mxu0 0.0
        %363 = vmatprep.subr.mxu0 0.0
        %364 = vmatpush2.msra.mxu0 0.0
        %365 = vmatprep.subr.mxu0 0.0
        %366 = vmatpush2.msra.mxu0 0.0
        %367 = vmatprep.subr.mxu0 0.0
        %368 = vmatpush2.msra.mxu0 0.0
        %369 = vmatprep.subr.mxu0 0.0
        %370 = vmatpush2.msra.mxu0 0.0
        %371 = vmatprep.mubr.f32.mxu0 0.0
        %372 = vmatmul.mubr.f32.gmra.mxu0 %v305
        %v373 = vpop.f32.mrf.mxu0
        %v374 = vadd.f32 %v301, %v373
        %v375 = vpop.f32.mrf.mxu0
        %v376 = vadd.f32 %v301, %v375
        %377 = vdwg.mxu0
        %378 = vst [vmem:[%s276] sm:$0xff] %v374
        %379 = vst [vmem:[%s276 + $0x8] sm:$0xff] %v376
        %v380 = vadd.f32 %v374, %v376
        %381 = vadd.xlane.f32.xlu0 %v380
        %v382 = vpop.xlane.xlu0 %381
        %vm383 = vcmask 7168
        %384 = vst.msk [vmem:[%s281] sm:$0xff] %vm383, %v382
        %v385 = vmul.f32 %v374, %v374
        %v386 = vmul.f32 %v376, %v376
        %v387 = vadd.f32 %v385, %v386
        %388 = vadd.xlane.f32.xlu0 %v387
        %v389 = vpop.xlane.xlu0 %388
        %390 = vst.msk [vmem:[%s285] sm:$0xff] %vm383, %v389
        %s391 = smul.u32 2, %s17
        %p392 = scmp.lt.s32.totalorder %s391, 3
        %s393 = scalar_select %p392, %s391, 3
        %s394 = smul.addr %s393, 8
        %s395 = scalar_lea.vmem %s3, %s394
        %p396 = scmp.lt.s32.totalorder %s17, 1
        %s397 = scalar_select %p396, %s17, 1
        %s398 = smul.addr %s397, 8
        %s399 = scalar_lea.vmem %s4, %s398
        %p400 = scmp.lt.s32.totalorder %s17, 1
        %s401 = scalar_select %p400, %s17, 1
        %s402 = smul.addr %s401, 8
        %s403 = scalar_lea.vmem %s5, %s402
        // Predicated region
        $region56: #{decoder_forward.2} parent=50 // pred_check
          %p404 = pneg %p103
        $region57: #{decoder_forward.2} parent=50 // pred_check_branch
          %406 = sbr.rel (%p404) target = $region59
        $region58: #{decoder_forward.2} parent=50 // pred_region
          %s407 = smul.u32 2, %s17
        $region59: #{decoder_forward.2} parent=50 // pred_fallthru
          _
        // Predicated region
        $region60: #{decoder_forward.2} parent=50 // pred_check
          %p408 = pneg %p129
        $region61: #{decoder_forward.2} parent=50 // pred_check_branch
          %410 = sbr.rel (%p408) target = $region63
        $region62: #{decoder_forward.2} parent=50 // pred_region
          _
        $region63: #{decoder_forward.2} parent=50 // pred_fallthru
          _
        // Predicated region
        $region64: #{decoder_forward.2} parent=50 // pred_check
          %p411 = pneg %p155
        $region65: #{decoder_forward.2} parent=50 // pred_check_branch
          %413 = sbr.rel (%p411) target = $region67
        $region66: #{decoder_forward.2} parent=50 // pred_region
          _
        $region67: #{decoder_forward.2} parent=50 // pred_fallthru
          _
      $region51: #{decoder_forward.2} parent=5 // pred_fallthru
        _
      %p414 = scmp.le.s32.totalorder 2, %s12
      // Predicated region
      $region68: #{decoder_forward.2} parent=5 // pred_check
        %p415 = pneg %p414
      $region69: #{decoder_forward.2} parent=5 // pred_check_branch
        %417 = sbr.rel (%p415) target = $region71
      $region70: #{decoder_forward.2} parent=5 // pred_region
        %s418 = ssub.s32 %s12, 2
        // Predicated region
        $region72: #{decoder_forward.2} parent=70 // pred_check
          %p419 = pneg %p109
        $region73: #{decoder_forward.2} parent=70 // pred_check_branch
          %421 = sbr.rel (%p419) target = $region75
        $region74: #{decoder_forward.2} parent=70 // pred_region
          %s422 = smul.u32 2, %s18
          %p423 = scmp.lt.s32.totalorder %s422, 3
          %s424 = scalar_select %p423, %s422, 3
          %s425 = smul.addr %s424, 8
          %s426 = scalar_lea.vmem %s3, %s425
        $region75: #{decoder_forward.2} parent=70 // pred_fallthru
          _
        // Predicated region
        $region76: #{decoder_forward.2} parent=70 // pred_check
          %p427 = pneg %p135
        $region77: #{decoder_forward.2} parent=70 // pred_check_branch
          %429 = sbr.rel (%p427) target = $region79
        $region78: #{decoder_forward.2} parent=70 // pred_region
          %p430 = scmp.lt.s32.totalorder %s18, 1
          %s431 = scalar_select %p430, %s18, 1
          %s432 = smul.addr %s431, 8
          %s433 = scalar_lea.vmem %s4, %s432
        $region79: #{decoder_forward.2} parent=70 // pred_fallthru
          _
        // Predicated region
        $region80: #{decoder_forward.2} parent=70 // pred_check
          %p434 = pneg %p161
        $region81: #{decoder_forward.2} parent=70 // pred_check_branch
          %436 = sbr.rel (%p434) target = $region83
        $region82: #{decoder_forward.2} parent=70 // pred_region
          %p437 = scmp.lt.s32.totalorder %s18, 1
          %s438 = scalar_select %p437, %s18, 1
          %s439 = smul.addr %s438, 8
          %s440 = scalar_lea.vmem %s5, %s439
        $region83: #{decoder_forward.2} parent=70 // pred_fallthru
          _
      $region71: #{decoder_forward.2} parent=5 // pred_fallthru
        _
    $region6: #{decoder_forward.2} parent=1 // loop_footer
      %s16 = sadd.s32 1, %s12
    $region7: #{decoder_forward.2} parent=1 // loop_footer_branch
      %11 = sbr.rel target = $region3
    $region8: #{decoder_forward.2} parent=1 // loop_exit
      _

// kernel: decoder_forward.3
$region0: #{decoder_forward.3}
  #allocation0 [shape = 'u32[]', space=smem, size = 0x4, offset = 0x4, fixed_abs, tag = 'smem constant byte address 0x4 - core index']
  #allocation1 [shape = 'u32[144,128]{1,0:T(1,128)}', space=vmem, size = 0x12000, scoped, tag = 'internal scratch']
  %s0 = inlined_call_operand.vmem [shape: f32[8,2,16,16], index: 0, kind: input, shape index: {}]
  %s1 = inlined_call_operand.vmem [shape: f32[8,1,1], index: 1, kind: input, shape index: {}]
  %s2 = inlined_call_operand.vmem [shape: f32[8,1,1], index: 2, kind: input, shape index: {}]
  %s3 = inlined_call_operand.vmem [shape: f32[8,16,32], index: 3, kind: input, shape index: {}]
  %s4 = inlined_call_operand.vmem [shape: f32[8,32,16], index: 4, kind: input, shape index: {}]
  %s5 = inlined_call_operand.vmem [shape: f32[2,8,32,32], index: 5, kind: input, shape index: {}]
  %s6 = inlined_call_operand.hbm [shape: f32[2,8,32,32], index: 6, kind: output, shape index: {}]
  %s7 = sld [smem:[#allocation0]]
  $region95: #{decoder_forward.3} parent=0
    _
  %s9 = ssub.s32 1, %s7
  %s10 = scalar_select 0, %s9, %s7
  $region1: #{decoder_forward.3} parent=0
    #allocation2 [shape = 'u8[131072]{0}', space=vmem, size = 0x20000, scoped, tag = 'input window, operand 0']
    #allocation3 [shape = 'u8[262144]{0}', space=vmem, size = 0x40000, scoped, tag = 'output window, operand 0']
    #allocation4 [shape = 's32[2]{0}', space=sflag, size = 0x8, scoped, tag = 'scoped memory for decoder_forward.3']
    %11 = vsyncpa [#allocation4], 0
    %s12 = scalar_lea.sflag [#allocation4], 1
    %13 = vsyncpa %s12, 0
    loop: start=0, step=1, limit=4
    $region2: #{decoder_forward.3} parent=1 // loop_pre_header
      _
    $region3: #{decoder_forward.3} parent=1 // loop_header
      %s15 = sphi 0, %s19
      %p16 = scmp.ge.s32.totalorder %s15, 4
      %s25 = sphi 0, %s27
      %s28 = sphi 0, %s25
      %s29 = sphi 0, %s28
      %s45 = sphi 0, %s29
      %s49 = sphi 0, %s49
      %s51 = sphi 0, %s49
      %s52 = sphi 0, %s51
      %s66 = sphi 0, %s52
      %s70 = sphi 0, %s70
      %s72 = sphi 0, %s70
      %s73 = sphi 0, %s72
      %s87 = sphi 0, %s73
      %s91 = sphi 0, %s91
      %s93 = sphi 0, %s91
      %s94 = sphi 0, %s93
      %s108 = sphi 0, %s94
      %s112 = sphi 0, %s112
      %s114 = sphi 0, %s112
      %s115 = sphi 0, %s114
      %s129 = sphi 0, %s115
      %s135 = sphi 0, %s137
      %s138 = sphi 0, %s135
      %s139 = sphi 0, %s138
      %s155 = sphi 0, %s139
      %s161 = sphi 0, %s163
      %s164 = sphi 0, %s161
      %s165 = sphi 0, %s164
      %s181 = sphi 0, %s165
    $region4: #{decoder_forward.3} parent=1 // loop_header_branch
      %18 = sbr.rel (%p16) target = $region8
    $region5: #{decoder_forward.3} parent=1 // loop_body
      %s20 = ssub.s32 %s15, 1
      %s21 = ssub.s32 %s15, 2
      %s22 = sadd.s32 %s15, 1
      %s23 = ssub.s32 %s15, %s22
      %p24 = scmp.eq.s32.totalorder %s23, 0
      %s26 = sadd.s32 %s25, 1
      %s27 = scalar_select %p24, %s25, %s26
      %p30 = pneg %p24
      %p31 = scmp.eq.s32.totalorder %s15, 1
      %p32 = por %p30, %p31
      %p33 = scmp.ne.s32.totalorder %s25, %s28
      %p34 = scmp.eq.s32.totalorder %s15, 0
      %p35 = por %p33, %p34
      %p36 = scmp.ne.s32.totalorder %s25, %s28
      %p37 = scmp.eq.s32.totalorder %s20, 1
      %p38 = por %p36, %p37
      %p39 = scmp.ne.s32.totalorder %s28, %s29
      %p40 = scmp.eq.s32.totalorder %s20, 0
      %p41 = por %p39, %p40
      %p42 = scmp.ne.s32.totalorder %s28, %s29
      %p43 = scmp.eq.s32.totalorder %s21, 1
      %p44 = por %p42, %p43
      %p46 = scmp.ne.s32.totalorder %s29, %s45
      %p47 = scmp.eq.s32.totalorder %s21, 0
      %p48 = por %p46, %p47
      %s50 = sadd.s32 %s49, 1
      %p53 = scmp.eq.s32.totalorder %s15, 1
      %p54 = scmp.ne.s32.totalorder %s49, %s51
      %p55 = scmp.eq.s32.totalorder %s15, 0
      %p56 = por %p54, %p55
      %p57 = scmp.ne.s32.totalorder %s49, %s51
      %p58 = scmp.eq.s32.totalorder %s20, 1
      %p59 = por %p57, %p58
      %p60 = scmp.ne.s32.totalorder %s51, %s52
      %p61 = scmp.eq.s32.totalorder %s20, 0
      %p62 = por %p60, %p61
      %p63 = scmp.ne.s32.totalorder %s51, %s52
      %p64 = scmp.eq.s32.totalorder %s21, 1
      %p65 = por %p63, %p64
      %p67 = scmp.ne.s32.totalorder %s52, %s66
      %p68 = scmp.eq.s32.totalorder %s21, 0
      %p69 = por %p67, %p68
      %s71 = sadd.s32 %s70, 1
      %p74 = scmp.eq.s32.totalorder %s15, 1
      %p75 = scmp.ne.s32.totalorder %s70, %s72
      %p76 = scmp.eq.s32.totalorder %s15, 0
      %p77 = por %p75, %p76
      %p78 = scmp.ne.s32.totalorder %s70, %s72
      %p79 = scmp.eq.s32.totalorder %s20, 1
      %p80 = por %p78, %p79
      %p81 = scmp.ne.s32.totalorder %s72, %s73
      %p82 = scmp.eq.s32.totalorder %s20, 0
      %p83 = por %p81, %p82
      %p84 = scmp.ne.s32.totalorder %s72, %s73
      %p85 = scmp.eq.s32.totalorder %s21, 1
      %p86 = por %p84, %p85
      %p88 = scmp.ne.s32.totalorder %s73, %s87
      %p89 = scmp.eq.s32.totalorder %s21, 0
      %p90 = por %p88, %p89
      %s92 = sadd.s32 %s91, 1
      %p95 = scmp.eq.s32.totalorder %s15, 1
      %p96 = scmp.ne.s32.totalorder %s91, %s93
      %p97 = scmp.eq.s32.totalorder %s15, 0
      %p98 = por %p96, %p97
      %p99 = scmp.ne.s32.totalorder %s91, %s93
      %p100 = scmp.eq.s32.totalorder %s20, 1
      %p101 = por %p99, %p100
      %p102 = scmp.ne.s32.totalorder %s93, %s94
      %p103 = scmp.eq.s32.totalorder %s20, 0
      %p104 = por %p102, %p103
      %p105 = scmp.ne.s32.totalorder %s93, %s94
      %p106 = scmp.eq.s32.totalorder %s21, 1
      %p107 = por %p105, %p106
      %p109 = scmp.ne.s32.totalorder %s94, %s108
      %p110 = scmp.eq.s32.totalorder %s21, 0
      %p111 = por %p109, %p110
      %s113 = sadd.s32 %s112, 1
      %p116 = scmp.eq.s32.totalorder %s15, 1
      %p117 = scmp.ne.s32.totalorder %s112, %s114
      %p118 = scmp.eq.s32.totalorder %s15, 0
      %p119 = por %p117, %p118
      %p120 = scmp.ne.s32.totalorder %s112, %s114
      %p121 = scmp.eq.s32.totalorder %s20, 1
      %p122 = por %p120, %p121
      %p123 = scmp.ne.s32.totalorder %s114, %s115
      %p124 = scmp.eq.s32.totalorder %s20, 0
      %p125 = por %p123, %p124
      %p126 = scmp.ne.s32.totalorder %s114, %s115
      %p127 = scmp.eq.s32.totalorder %s21, 1
      %p128 = por %p126, %p127
      %p130 = scmp.ne.s32.totalorder %s115, %s129
      %p131 = scmp.eq.s32.totalorder %s21, 0
      %p132 = por %p130, %p131
      %s133 = ssub.s32 %s15, %s22
      %p134 = scmp.eq.s32.totalorder %s133, 0
      %s136 = sadd.s32 %s135, 1
      %s137 = scalar_select %p134, %s135, %s136
      %p140 = pneg %p134
      %p141 = scmp.eq.s32.totalorder %s15, 1
      %p142 = por %p140, %p141
      %p143 = scmp.ne.s32.totalorder %s135, %s138
      %p144 = scmp.eq.s32.totalorder %s15, 0
      %p145 = por %p143, %p144
      %p146 = scmp.ne.s32.totalorder %s135, %s138
      %p147 = scmp.eq.s32.totalorder %s20, 1
      %p148 = por %p146, %p147
      %p149 = scmp.ne.s32.totalorder %s138, %s139
      %p150 = scmp.eq.s32.totalorder %s20, 0
      %p151 = por %p149, %p150
      %p152 = scmp.ne.s32.totalorder %s138, %s139
      %p153 = scmp.eq.s32.totalorder %s21, 1
      %p154 = por %p152, %p153
      %p156 = scmp.ne.s32.totalorder %s139, %s155
      %p157 = scmp.eq.s32.totalorder %s21, 0
      %p158 = por %p156, %p157
      %s159 = ssub.s32 %s15, %s22
      %p160 = scmp.eq.s32.totalorder %s159, 0
      %s162 = sadd.s32 %s161, 1
      %s163 = scalar_select %p160, %s161, %s162
      %p166 = pneg %p160
      %p167 = scmp.eq.s32.totalorder %s15, 1
      %p168 = por %p166, %p167
      %p169 = scmp.ne.s32.totalorder %s161, %s164
      %p170 = scmp.eq.s32.totalorder %s15, 0
      %p171 = por %p169, %p170
      %p172 = scmp.ne.s32.totalorder %s161, %s164
      %p173 = scmp.eq.s32.totalorder %s20, 1
      %p174 = por %p172, %p173
      %p175 = scmp.ne.s32.totalorder %s164, %s165
      %p176 = scmp.eq.s32.totalorder %s20, 0
      %p177 = por %p175, %p176
      %p178 = scmp.ne.s32.totalorder %s164, %s165
      %p179 = scmp.eq.s32.totalorder %s21, 1
      %p180 = por %p178, %p179
      %p182 = scmp.ne.s32.totalorder %s165, %s181
      %p183 = scmp.eq.s32.totalorder %s21, 0
      %p184 = por %p182, %p183
      %p185 = scmp.le.s32.totalorder 1, %s15
      %p186 = scmp.lt.s32.totalorder %s15, 3
      %p187 = pnand %p185, %p186
      %p188 = pneg %p187
      // Predicated region
      $region9: #{decoder_forward.3} parent=5 // pred_check
        _
      $region10: #{decoder_forward.3} parent=5 // pred_check_branch
        %190 = sbr.rel (%p187) target = $region12
      $region11: #{decoder_forward.3} parent=5 // pred_region
        %s191 = ssub.s32 %s15, 1
        // Predicated region
        $region13: #{decoder_forward.3} parent=11 // pred_check
          %p192 = pneg %p62
        $region14: #{decoder_forward.3} parent=11 // pred_check_branch
          %194 = sbr.rel (%p192) target = $region16
        $region15: #{decoder_forward.3} parent=11 // pred_region
          _
        $region16: #{decoder_forward.3} parent=11 // pred_fallthru
          _
        // Predicated region
        $region17: #{decoder_forward.3} parent=11 // pred_check
          %p195 = pneg %p83
        $region18: #{decoder_forward.3} parent=11 // pred_check_branch
          %197 = sbr.rel (%p195) target = $region20
        $region19: #{decoder_forward.3} parent=11 // pred_region
          _
        $region20: #{decoder_forward.3} parent=11 // pred_fallthru
          _
        // Predicated region
        $region21: #{decoder_forward.3} parent=11 // pred_check
          %p198 = pneg %p104
        $region22: #{decoder_forward.3} parent=11 // pred_check_branch
          %200 = sbr.rel (%p198) target = $region24
        $region23: #{decoder_forward.3} parent=11 // pred_region
          _
        $region24: #{decoder_forward.3} parent=11 // pred_fallthru
          _
        // Predicated region
        $region25: #{decoder_forward.3} parent=11 // pred_check
          %p201 = pneg %p125
        $region26: #{decoder_forward.3} parent=11 // pred_check_branch
          %203 = sbr.rel (%p201) target = $region28
        $region27: #{decoder_forward.3} parent=11 // pred_region
          _
        $region28: #{decoder_forward.3} parent=11 // pred_fallthru
          _
      $region12: #{decoder_forward.3} parent=5 // pred_fallthru
        _
      %p204 = scmp.lt.s32.totalorder %s15, 2
      // Predicated region
      $region29: #{decoder_forward.3} parent=5 // pred_check
        %p205 = pneg %p204
      $region30: #{decoder_forward.3} parent=5 // pred_check_branch
        %207 = sbr.rel (%p205) target = $region32
      $region31: #{decoder_forward.3} parent=5 // pred_region
        // Predicated region
        $region33: #{decoder_forward.3} parent=31 // pred_check
          %p208 = pneg %p35
        $region34: #{decoder_forward.3} parent=31 // pred_check_branch
          %210 = sbr.rel (%p208) target = $region36
        $region35: #{decoder_forward.3} parent=31 // pred_region
          %s211 = sand.u32 %s25, 1
          %s212 = sand.u32 %s25, 1
          %s213 = smul.addr %s212, 128
          %s214 = scalar_lea.vmem [#allocation2], %s213
          %s215 = smul.addr %s15, 2
          %s216 = smul.addr %s215, 8
          %s217 = scalar_lea.vmem %s0, %s216
          // Predicated region
          $region37: #{decoder_forward.3} parent=35 // pred_check
            _
          $region38: #{decoder_forward.3} parent=35 // pred_check_branch
            %219 = sbr.rel (0) target = $region40
          $region39: #{decoder_forward.3} parent=35 // pred_region
            // Predicated region
            $region41: #{decoder_forward.3} parent=39 // pred_check
              _
            $region42: #{decoder_forward.3} parent=39 // pred_check_branch
              %221 = sbr.rel (0) target = $region44
            $region43: #{decoder_forward.3} parent=39 // pred_region
              // Predicated region
              $region56: #{decoder_forward.3} parent=43 // pred_check
                _
              $region57: #{decoder_forward.3} parent=43 // pred_check_branch
                %267 = sbr.rel (0) target = $region59
              $region58: #{decoder_forward.3} parent=43 // pred_region
                loop: start=0, step=1, limit=1
                $region60: #{decoder_forward.3} parent=58 // loop_pre_header
                  _
                $region61: #{decoder_forward.3} parent=58 // loop_header
                  %s269 = sphi 0, %s273
                  %p270 = scmp.ge.s32.totalorder %s269, 1
                  %s274 = sphi %s217, %s217
                  %s275 = sphi %s214, %s214
                $region62: #{decoder_forward.3} parent=58 // loop_header_branch
                  %272 = sbr.rel (%p270) target = $region66
                $region63: #{decoder_forward.3} parent=58 // loop_body
                  %v276 = vld [vmem:[%s274] sm:$0xff]
                  %277 = vst [vmem:[%s275] sm:$0xff] %v276
                  %v278 = vld [vmem:[%s274 + $0x8] sm:$0xff]
                  %279 = vst [vmem:[%s275 + $0x8] sm:$0xff] %v278
                  %v280 = vld [vmem:[%s274 + $0x20] sm:$0xff]
                  %281 = vst [vmem:[%s275 + $0x10] sm:$0xff] %v280
                  %v282 = vld [vmem:[%s274 + $0x28] sm:$0xff]
                  %283 = vst [vmem:[%s275 + $0x18] sm:$0xff] %v282
                  %v284 = vld [vmem:[%s274 + $0x40] sm:$0xff]
                  %285 = vst [vmem:[%s275 + $0x20] sm:$0xff] %v284
                  %v286 = vld [vmem:[%s274 + $0x48] sm:$0xff]
                  %287 = vst [vmem:[%s275 + $0x28] sm:$0xff] %v286
                  %v288 = vld [vmem:[%s274 + $0x60] sm:$0xff]
                  %289 = vst [vmem:[%s275 + $0x30] sm:$0xff] %v288
                  %v290 = vld [vmem:[%s274 + $0x68] sm:$0xff]
                  %291 = vst [vmem:[%s275 + $0x38] sm:$0xff] %v290
                  %v292 = vld [vmem:[%s274 + $0x80] sm:$0xff]
                  %293 = vst [vmem:[%s275 + $0x40] sm:$0xff] %v292
                  %v294 = vld [vmem:[%s274 + $0x88] sm:$0xff]
                  %295 = vst [vmem:[%s275 + $0x48] sm:$0xff] %v294
                  %v296 = vld [vmem:[%s274 + $0xa0] sm:$0xff]
                  %297 = vst [vmem:[%s275 + $0x50] sm:$0xff] %v296
                  %v298 = vld [vmem:[%s274 + $0xa8] sm:$0xff]
                  %299 = vst [vmem:[%s275 + $0x58] sm:$0xff] %v298
                  %v300 = vld [vmem:[%s274 + $0xc0] sm:$0xff]
                  %301 = vst [vmem:[%s275 + $0x60] sm:$0xff] %v300
                  %v302 = vld [vmem:[%s274 + $0xc8] sm:$0xff]
                  %303 = vst [vmem:[%s275 + $0x68] sm:$0xff] %v302
                  %v304 = vld [vmem:[%s274 + $0xe0] sm:$0xff]
                  %305 = vst [vmem:[%s275 + $0x70] sm:$0xff] %v304
                  %v306 = vld [vmem:[%s274 + $0xe8] sm:$0xff]
                  %307 = vst [vmem:[%s275 + $0x78] sm:$0xff] %v306
                $region64: #{decoder_forward.3} parent=58 // loop_footer
                  %s273 = sadd.s32 1, %s269
                $region65: #{decoder_forward.3} parent=58 // loop_footer_branch
                  %268 = sbr.rel target = $region61
                $region66: #{decoder_forward.3} parent=58 // loop_exit
                  _
              $region59: #{decoder_forward.3} parent=43 // pred_fallthru
                _
              // Predicated region
              $region67: #{decoder_forward.3} parent=43 // pred_check
                _
              $region68: #{decoder_forward.3} parent=43 // pred_check_branch
                %309 = sbr.rel target = $region70
              $region69: #{decoder_forward.3} parent=43 // pred_region
                _
              $region70: #{decoder_forward.3} parent=43 // pred_fallthru
                _
            $region44: #{decoder_forward.3} parent=39 // pred_fallthru
              _
            // Predicated region
            $region45: #{decoder_forward.3} parent=39 // pred_check
              _
            $region46: #{decoder_forward.3} parent=39 // pred_check_branch
              %223 = sbr.rel target = $region48
            $region47: #{decoder_forward.3} parent=39 // pred_region
              %s225 = ssub.s32 256, 1
              loop: start=0, step=1, limit=1
              $region49: #{decoder_forward.3} parent=47 // loop_pre_header
                _
              $region50: #{decoder_forward.3} parent=47 // loop_header
                %s227 = sphi 0, %s231
                %p228 = scmp.ge.s32.totalorder %s227, 1
                %s232 = sphi %s217, %s217
                %s233 = sphi %s214, %s214
              $region51: #{decoder_forward.3} parent=47 // loop_header_branch
                %230 = sbr.rel (%p228) target = $region55
              $region52: #{decoder_forward.3} parent=47 // loop_body
                %v234 = vld [vmem:[%s232] sm:%s225]
                %235 = vst [vmem:[%s233] sm:%s225] %v234
                %v236 = vld [vmem:[%s232 + $0x8] sm:%s225]
                %237 = vst [vmem:[%s233 + $0x8] sm:%s225] %v236
                %v238 = vld [vmem:[%s232 + $0x20] sm:%s225]
                %239 = vst [vmem:[%s233 + $0x10] sm:%s225] %v238
                %v240 = vld [vmem:[%s232 + $0x28] sm:%s225]
                %241 = vst [vmem:[%s233 + $0x18] sm:%s225] %v240
                %v242 = vld [vmem:[%s232 + $0x40] sm:%s225]
                %243 = vst [vmem:[%s233 + $0x20] sm:%s225] %v242
                %v244 = vld [vmem:[%s232 + $0x48] sm:%s225]
                %245 = vst [vmem:[%s233 + $0x28] sm:%s225] %v244
                %v246 = vld [vmem:[%s232 + $0x60] sm:%s225]
                %247 = vst [vmem:[%s233 + $0x30] sm:%s225] %v246
                %v248 = vld [vmem:[%s232 + $0x68] sm:%s225]
                %249 = vst [vmem:[%s233 + $0x38] sm:%s225] %v248
                %v250 = vld [vmem:[%s232 + $0x80] sm:%s225]
                %251 = vst [vmem:[%s233 + $0x40] sm:%s225] %v250
                %v252 = vld [vmem:[%s232 + $0x88] sm:%s225]
                %253 = vst [vmem:[%s233 + $0x48] sm:%s225] %v252
                %v254 = vld [vmem:[%s232 + $0xa0] sm:%s225]
                %255 = vst [vmem:[%s233 + $0x50] sm:%s225] %v254
                %v256 = vld [vmem:[%s232 + $0xa8] sm:%s225]
                %257 = vst [vmem:[%s233 + $0x58] sm:%s225] %v256
                %v258 = vld [vmem:[%s232 + $0xc0] sm:%s225]
                %259 = vst [vmem:[%s233 + $0x60] sm:%s225] %v258
                %v260 = vld [vmem:[%s232 + $0xc8] sm:%s225]
                %261 = vst [vmem:[%s233 + $0x68] sm:%s225] %v260
                %v262 = vld [vmem:[%s232 + $0xe0] sm:%s225]
                %263 = vst [vmem:[%s233 + $0x70] sm:%s225] %v262
                %v264 = vld [vmem:[%s232 + $0xe8] sm:%s225]
                %265 = vst [vmem:[%s233 + $0x78] sm:%s225] %v264
              $region53: #{decoder_forward.3} parent=47 // loop_footer
                %s231 = sadd.s32 1, %s227
              $region54: #{decoder_forward.3} parent=47 // loop_footer_branch
                %226 = sbr.rel target = $region50
              $region55: #{decoder_forward.3} parent=47 // loop_exit
                _
            $region48: #{decoder_forward.3} parent=39 // pred_fallthru
              _
          $region40: #{decoder_forward.3} parent=35 // pred_fallthru
            _
          %310 = vnop
        $region36: #{decoder_forward.3} parent=31 // pred_fallthru
          _
        // Predicated region
        $region71: #{decoder_forward.3} parent=31 // pred_check
          %p311 = pneg %p145
        $region72: #{decoder_forward.3} parent=31 // pred_check_branch
          %313 = sbr.rel (%p311) target = $region74
        $region73: #{decoder_forward.3} parent=31 // pred_region
          %p314 = scmp.lt.s32.totalorder %s15, 1
          %s315 = scalar_select %p314, %s15, 1
          %s316 = smul.addr %s315, 32
          %s317 = smul.addr %s316, 8
          %s318 = scalar_lea.vmem %s5, %s317
        $region74: #{decoder_forward.3} parent=31 // pred_fallthru
          _
      $region32: #{decoder_forward.3} parent=5 // pred_fallthru
        _
      %p319 = scmp.le.s32.totalorder 1, %s15
      %p320 = scmp.lt.s32.totalorder %s15, 3
      %p321 = pnand %p319, %p320
      %p322 = pneg %p321
      // Predicated region
      $region75: #{decoder_forward.3} parent=5 // pred_check
        _
      $region76: #{decoder_forward.3} parent=5 // pred_check_branch
        %324 = sbr.rel (%p321) target = $region78
      $region77: #{decoder_forward.3} parent=5 // pred_region
        %s325 = ssub.s32 %s15, 1
        %s326 = sand.u32 %s28, 1
        %s327 = sand.u32 %s28, 1
        %s328 = smul.addr %s327, 128
        %s329 = scalar_lea.vmem [#allocation2], %s328
        // Predicated region
        $region79: #{decoder_forward.3} parent=77 // pred_check
          %p330 = pneg %p41
        $region80: #{decoder_forward.3} parent=77 // pred_check_branch
          %332 = sbr.rel (%p330) target = $region82
        $region81: #{decoder_forward.3} parent=77 // pred_region
          _
        $region82: #{decoder_forward.3} parent=77 // pred_fallthru
          _
        %s333 = sand.u32 %s28, 1
        %s334 = sand.u32 %s28, 1
        %s335 = smul.addr %s334, 128
        %s336 = scalar_lea.vmem [#allocation2], %s335
        %p337 = pneg %p41
        %p338 = pneg %p38
        %p339 = pneg %p62
        %p340 = pneg %p59
        %p341 = pneg %p83
        %p342 = pneg %p80
        %p343 = pneg %p104
        %p344 = pneg %p101
        %p345 = pneg %p125
        %p346 = pneg %p122
        %p347 = scmp.lt.s32.totalorder %s20, 1
        %s348 = scalar_select %p347, %s20, 1
        %s349 = smul.addr %s348, 32
        %s350 = smul.addr %s349, 8
        %s351 = scalar_lea.vmem %s5, %s350
        %p352 = pneg %p151
        %p353 = pneg %p148
        %p354 = pneg %p177
        %p355 = pneg %p174
        %s356 = sand.u32 %s164, 1
        %s357 = scalar_lea.sflag [#allocation4], %s356
        %s358 = sand.u32 %s164, 1
        %s359 = smul.addr %s358, 256
        %s360 = scalar_lea.vmem [#allocation3], %s359
        %p361 = scmp.lt.s32.totalorder %s20, 1
        %s362 = scalar_select %p361, %s20, 1
        %s363 = smul.addr %s362, 32
        %s364 = smul.addr %s363, 8
        %s365 = scalar_lea.vmem %s5, %s364
        %v366 = vld [vmem:[%s329] sm:$0xff]
        %v367 = vld [vmem:[%s329 + $0x8] sm:$0xff]
        %v368 = vld [vmem:[%s329 + $0x10] sm:$0xff]
        %v369 = vld [vmem:[%s329 + $0x18] sm:$0xff]
        %v370 = vld [vmem:[%s329 + $0x20] sm:$0xff]
        %v371 = vld [vmem:[%s329 + $0x28] sm:$0xff]
        %v372 = vld [vmem:[%s329 + $0x30] sm:$0xff]
        %v373 = vld [vmem:[%s329 + $0x38] sm:$0xff]
        %v374 = vld [vmem:[%s329 + $0x40] sm:$0xff]
        %v375 = vld [vmem:[%s329 + $0x48] sm:$0xff]
        %v376 = vld [vmem:[%s329 + $0x50] sm:$0xff]
        %v377 = vld [vmem:[%s329 + $0x58] sm:$0xff]
        %v378 = vld [vmem:[%s329 + $0x60] sm:$0xff]
        %v379 = vld [vmem:[%s329 + $0x68] sm:$0xff]
        %v380 = vld [vmem:[%s329 + $0x70] sm:$0xff]
        %v381 = vld [vmem:[%s329 + $0x78] sm:$0xff]
        %v382 = vld [vmem:[%s1] sm:$0x1]
        %v383 = vld [vmem:[%s1 + $0x1] sm:$0x1]
        %v384 = vld [vmem:[%s1 + $0x2] sm:$0x1]
        %v385 = vld [vmem:[%s1 + $0x3] sm:$0x1]
        %v386 = vld [vmem:[%s1 + $0x4] sm:$0x1]
        %v387 = vld [vmem:[%s1 + $0x5] sm:$0x1]
        %v388 = vld [vmem:[%s1 + $0x6] sm:$0x1]
        %v389 = vld [vmem:[%s1 + $0x7] sm:$0x1]
        %v398 = vlaneseq
        %v399 = vshrl.u32 %v398, 7
        %v400 = vsub.s32 0, %v399
        %v401 = vrot.slane %v382, %v400
        %v402 = vlaneseq
        %v403 = vshrl.u32 %v402, 7
        %v404 = vsub.s32 0, %v403
        %v405 = vrot.slane %v383, %v404
        %v406 = vlaneseq
        %v407 = vshrl.u32 %v406, 7
        %v408 = vsub.s32 0, %v407
        %v409 = vrot.slane %v384, %v408
        %v410 = vlaneseq
        %v411 = vshrl.u32 %v410, 7
        %v412 = vsub.s32 0, %v411
        %v413 = vrot.slane %v385, %v412
        %v414 = vlaneseq
        %v415 = vshrl.u32 %v414, 7
        %v416 = vsub.s32 0, %v415
        %v417 = vrot.slane %v386, %v416
        %v418 = vlaneseq
        %v419 = vshrl.u32 %v418, 7
        %v420 = vsub.s32 0, %v419
        %v421 = vrot.slane %v387, %v420
        %v422 = vlaneseq
        %v423 = vshrl.u32 %v422, 7
        %v424 = vsub.s32 0, %v423
        %v425 = vrot.slane %v388, %v424
        %v426 = vlaneseq
        %v427 = vshrl.u32 %v426, 7
        %v428 = vsub.s32 0, %v427
        %v429 = vrot.slane %v389, %v428
        %430 = vset.pattern.permute.xlu0 0
        %431 = vperm.xlu0 %430, %v401
        %v432 = vpop.permute.xlu0 %431
        %434 = vset.pattern.permute.xlu0 0
        %435 = vperm.xlu0 %434, %v405
        %v436 = vpop.permute.xlu0 %435
        %438 = vset.pattern.permute.xlu0 0
        %439 = vperm.xlu0 %438, %v409
        %v440 = vpop.permute.xlu0 %439
        %442 = vset.pattern.permute.xlu0 0
        %443 = vperm.xlu0 %442, %v413
        %v444 = vpop.permute.xlu0 %443
        %446 = vset.pattern.permute.xlu0 0
        %447 = vperm.xlu0 %446, %v417
        %v448 = vpop.permute.xlu0 %447
        %450 = vset.pattern.permute.xlu0 0
        %451 = vperm.xlu0 %450, %v421
        %v452 = vpop.permute.xlu0 %451
        %454 = vset.pattern.permute.xlu0 0
        %455 = vperm.xlu0 %454, %v425
        %v456 = vpop.permute.xlu0 %455
        %458 = vset.pattern.permute.xlu0 0
        %459 = vperm.xlu0 %458, %v429
        %v460 = vpop.permute.xlu0 %459
        %v462 = vmul.f32 %v366, %v432
        %v463 = vmul.f32 %v367, %v432
        %v464 = vmul.f32 %v368, %v436
        %v465 = vmul.f32 %v369, %v436
        %v466 = vmul.f32 %v370, %v440
        %v467 = vmul.f32 %v371, %v440
        %v468 = vmul.f32 %v372, %v444
        %v469 = vmul.f32 %v373, %v444
        %v470 = vmul.f32 %v374, %v448
        %v471 = vmul.f32 %v375, %v448
        %v472 = vmul.f32 %v376, %v452
        %v473 = vmul.f32 %v377, %v452
        %v474 = vmul.f32 %v378, %v456
        %v475 = vmul.f32 %v379, %v456
        %v476 = vmul.f32 %v380, %v460
        %v477 = vmul.f32 %v381, %v460
        %v478 = vld [vmem:[%s2] sm:$0x1]
        %v479 = vld [vmem:[%s2 + $0x1] sm:$0x1]
        %v480 = vld [vmem:[%s2 + $0x2] sm:$0x1]
        %v481 = vld [vmem:[%s2 + $0x3] sm:$0x1]
        %v482 = vld [vmem:[%s2 + $0x4] sm:$0x1]
        %v483 = vld [vmem:[%s2 + $0x5] sm:$0x1]
        %v484 = vld [vmem:[%s2 + $0x6] sm:$0x1]
        %v485 = vld [vmem:[%s2 + $0x7] sm:$0x1]
        %v494 = vlaneseq
        %v495 = vshrl.u32 %v494, 7
        %v496 = vsub.s32 0, %v495
        %v497 = vrot.slane %v478, %v496
        %v498 = vlaneseq
        %v499 = vshrl.u32 %v498, 7
        %v500 = vsub.s32 0, %v499
        %v501 = vrot.slane %v479, %v500
        %v502 = vlaneseq
        %v503 = vshrl.u32 %v502, 7
        %v504 = vsub.s32 0, %v503
        %v505 = vrot.slane %v480, %v504
        %v506 = vlaneseq
        %v507 = vshrl.u32 %v506, 7
        %v508 = vsub.s32 0, %v507
        %v509 = vrot.slane %v481, %v508
        %v510 = vlaneseq
        %v511 = vshrl.u32 %v510, 7
        %v512 = vsub.s32 0, %v511
        %v513 = vrot.slane %v482, %v512
        %v514 = vlaneseq
        %v515 = vshrl.u32 %v514, 7
        %v516 = vsub.s32 0, %v515
        %v517 = vrot.slane %v483, %v516
        %v518 = vlaneseq
        %v519 = vshrl.u32 %v518, 7
        %v520 = vsub.s32 0, %v519
        %v521 = vrot.slane %v484, %v520
        %v522 = vlaneseq
        %v523 = vshrl.u32 %v522, 7
        %v524 = vsub.s32 0, %v523
        %v525 = vrot.slane %v485, %v524
        %526 = vset.pattern.permute.xlu0 0
        %527 = vperm.xlu0 %526, %v497
        %v528 = vpop.permute.xlu0 %527
        %530 = vset.pattern.permute.xlu0 0
        %531 = vperm.xlu0 %530, %v501
        %v532 = vpop.permute.xlu0 %531
        %534 = vset.pattern.permute.xlu0 0
        %535 = vperm.xlu0 %534, %v505
        %v536 = vpop.permute.xlu0 %535
        %538 = vset.pattern.permute.xlu0 0
        %539 = vperm.xlu0 %538, %v509
        %v540 = vpop.permute.xlu0 %539
        %542 = vset.pattern.permute.xlu0 0
        %543 = vperm.xlu0 %542, %v513
        %v544 = vpop.permute.xlu0 %543
        %546 = vset.pattern.permute.xlu0 0
        %547 = vperm.xlu0 %546, %v517
        %v548 = vpop.permute.xlu0 %547
        %550 = vset.pattern.permute.xlu0 0
        %551 = vperm.xlu0 %550, %v521
        %v552 = vpop.permute.xlu0 %551
        %554 = vset.pattern.permute.xlu0 0
        %555 = vperm.xlu0 %554, %v525
        %v556 = vpop.permute.xlu0 %555
        %v558 = vadd.f32 %v462, %v528
        %v559 = vadd.f32 %v463, %v528
        %v560 = vadd.f32 %v464, %v532
        %v561 = vadd.f32 %v465, %v532
        %v562 = vadd.f32 %v466, %v536
        %v563 = vadd.f32 %v467, %v536
        %v564 = vadd.f32 %v468, %v540
        %v565 = vadd.f32 %v469, %v540
        %v566 = vadd.f32 %v470, %v544
        %v567 = vadd.f32 %v471, %v544
        %v568 = vadd.f32 %v472, %v548
        %v569 = vadd.f32 %v473, %v548
        %v570 = vadd.f32 %v474, %v552
        %v571 = vadd.f32 %v475, %v552
        %v572 = vadd.f32 %v476, %v556
        %v573 = vadd.f32 %v477, %v556
        %v574 = vld [vmem:[%s3] sm:$0xff]
        %v575 = vld [vmem:[%s3 + $0x8] sm:$0xff]
        %v576 = vld [vmem:[%s3 + $0x10] sm:$0xff]
        %v577 = vld [vmem:[%s3 + $0x18] sm:$0xff]
        %v578 = vld [vmem:[%s3 + $0x20] sm:$0xff]
        %v579 = vld [vmem:[%s3 + $0x28] sm:$0xff]
        %v580 = vld [vmem:[%s3 + $0x30] sm:$0xff]
        %v581 = vld [vmem:[%s3 + $0x38] sm:$0xff]
        %v582 = vld [vmem:[%s3 + $0x40] sm:$0xff]
        %v583 = vld [vmem:[%s3 + $0x48] sm:$0xff]
        %v584 = vld [vmem:[%s3 + $0x50] sm:$0xff]
        %v585 = vld [vmem:[%s3 + $0x58] sm:$0xff]
        %v586 = vld [vmem:[%s3 + $0x60] sm:$0xff]
        %v587 = vld [vmem:[%s3 + $0x68] sm:$0xff]
        %v588 = vld [vmem:[%s3 + $0x70] sm:$0xff]
        %v589 = vld [vmem:[%s3 + $0x78] sm:$0xff]
        %vm590 = vcmask 130048
        %v592 = vsel %vm590, %v558, 0
        %v595 = vsel %vm590, %v559, 0
        %597 = vmatprep.subr.mxu0 0.0
        %598 = vmatpush1.msra.mxu0 0.0
        %599 = vmatprep.subr.mxu0 0.0
        %600 = vmatpush1.msra.mxu0 0.0
        %601 = vmatprep.subr.mxu0 0.0
        %602 = vmatpush1.msra.mxu0 0.0
        %603 = vmatprep.subr.mxu0 0.0
        %604 = vmatpush1.msra.mxu0 0.0
        %605 = vmatprep.subr.mxu0 0.0
        %606 = vmatpush1.msra.mxu0 0.0
        %607 = vmatprep.subr.mxu0 0.0
        %608 = vmatpush1.msra.mxu0 0.0
        %609 = vmatprep.subr.mxu0 0.0
        %610 = vmatpush1.msra.mxu0 0.0
        %611 = vmatprep.subr.mxu0 0.0
        %612 = vmatpush1.msra.mxu0 0.0
        %613 = vmatprep.subr.mxu0 0.0
        %614 = vmatpush1.msra.mxu0 0.0
        %615 = vmatprep.subr.mxu0 0.0
        %616 = vmatpush1.msra.mxu0 0.0
        %617 = vmatprep.subr.mxu0 0.0
        %618 = vmatpush1.msra.mxu0 0.0
        %619 = vmatprep.subr.mxu0 0.0
        %620 = vmatpush1.msra.mxu0 0.0
        %621 = vmatprep.subr.mxu0 0.0
        %622 = vmatpush1.msra.mxu0 0.0
        %623 = vmatprep.subr.mxu0 0.0
        %624 = vmatpush1.msra.mxu0 0.0
        %625 = vmatprep.subr.mxu0 0.0
        %626 = vmatpush1.msra.mxu0 %v575
        %627 = vmatprep.subr.mxu0 0.0
        %628 = vmatpush1.msra.mxu0 %v574
        %629 = vmatprep.subr.mxu0 0.0
        %630 = vmatpush2.msra.mxu0 0.0
        %631 = vmatprep.subr.mxu0 0.0
        %632 = vmatpush2.msra.mxu0 0.0
        %633 = vmatprep.subr.mxu0 0.0
        %634 = vmatpush2.msra.mxu0 0.0
        %635 = vmatprep.subr.mxu0 0.0
        %636 = vmatpush2.msra.mxu0 0.0
        %637 = vmatprep.subr.mxu0 0.0
        %638 = vmatpush2.msra.mxu0 0.0
        %639 = vmatprep.subr.mxu0 0.0
        %640 = vmatpush2.msra.mxu0 0.0
        %641 = vmatprep.subr.mxu0 0.0
        %642 = vmatpush2.msra.mxu0 0.0
        %643 = vmatprep.subr.mxu0 0.0
        %644 = vmatpush2.msra.mxu0 0.0
        %645 = vmatprep.subr.mxu0 0.0
        %646 = vmatpush2.msra.mxu0 0.0
        %647 = vmatprep.subr.mxu0 0.0
        %648 = vmatpush2.msra.mxu0 0.0
        %649 = vmatprep.subr.mxu0 0.0
        %650 = vmatpush2.msra.mxu0 0.0
        %651 = vmatprep.subr.mxu0 0.0
        %652 = vmatpush2.msra.mxu0 0.0
        %653 = vmatprep.subr.mxu0 0.0
        %654 = vmatpush2.msra.mxu0 0.0
        %655 = vmatprep.subr.mxu0 0.0
        %656 = vmatpush2.msra.mxu0 0.0
        %657 = vmatprep.subr.mxu0 0.0
        %658 = vmatpush2.msra.mxu0 0.0
        %659 = vmatprep.subr.mxu0 0.0
        %660 = vmatpush2.msra.mxu0 0.0
        %661 = vmatprep.mubr.f32.mxu0 0.0
        %662 = vmatmul.mubr.f32.gmra.mxu0 %v592
        %v663 = vpop.f32.mrf.mxu0
        %v664 = vadd.f32 0.0, %v663
        %v665 = vpop.f32.mrf.mxu0
        %666 = vmatprep.mubr.f32.mxu0 0.0
        %667 = vmatmul.mubr.f32.gmra.mxu0 %v595
        %v668 = vpop.f32.mrf.mxu0
        %v669 = vadd.f32 0.0, %v668
        %v670 = vpop.f32.mrf.mxu0
        %671 = vdwg.mxu0
        %v673 = vsel %vm590, %v560, 0
        %v676 = vsel %vm590, %v561, 0
        %678 = vmatprep.subr.mxu0 0.0
        %679 = vmatpush1.msra.mxu0 0.0
        %680 = vmatprep.subr.mxu0 0.0
        %681 = vmatpush1.msra.mxu0 0.0
        %682 = vmatprep.subr.mxu0 0.0
        %683 = vmatpush1.msra.mxu0 0.0
        %684 = vmatprep.subr.mxu0 0.0
        %685 = vmatpush1.msra.mxu0 0.0
        %686 = vmatprep.subr.mxu0 0.0
        %687 = vmatpush1.msra.mxu0 0.0
        %688 = vmatprep.subr.mxu0 0.0
        %689 = vmatpush1.msra.mxu0 0.0
        %690 = vmatprep.subr.mxu0 0.0
        %691 = vmatpush1.msra.mxu0 0.0
        %692 = vmatprep.subr.mxu0 0.0
        %693 = vmatpush1.msra.mxu0 0.0
        %694 = vmatprep.subr.mxu0 0.0
        %695 = vmatpush1.msra.mxu0 0.0
        %696 = vmatprep.subr.mxu0 0.0
        %697 = vmatpush1.msra.mxu0 0.0
        %698 = vmatprep.subr.mxu0 0.0
        %699 = vmatpush1.msra.mxu0 0.0
        %700 = vmatprep.subr.mxu0 0.0
        %701 = vmatpush1.msra.mxu0 0.0
        %702 = vmatprep.subr.mxu0 0.0
        %703 = vmatpush1.msra.mxu0 0.0
        %704 = vmatprep.subr.mxu0 0.0
        %705 = vmatpush1.msra.mxu0 0.0
        %706 = vmatprep.subr.mxu0 0.0
        %707 = vmatpush1.msra.mxu0 %v577
        %708 = vmatprep.subr.mxu0 0.0
        %709 = vmatpush1.msra.mxu0 %v576
        %710 = vmatprep.subr.mxu0 0.0
        %711 = vmatpush2.msra.mxu0 0.0
        %712 = vmatprep.subr.mxu0 0.0
        %713 = vmatpush2.msra.mxu0 0.0
        %714 = vmatprep.subr.mxu0 0.0
        %715 = vmatpush2.msra.mxu0 0.0
        %716 = vmatprep.subr.mxu0 0.0
        %717 = vmatpush2.msra.mxu0 0.0
        %718 = vmatprep.subr.mxu0 0.0
        %719 = vmatpush2.msra.mxu0 0.0
        %720 = vmatprep.subr.mxu0 0.0
        %721 = vmatpush2.msra.mxu0 0.0
        %722 = vmatprep.subr.mxu0 0.0
        %723 = vmatpush2.msra.mxu0 0.0
        %724 = vmatprep.subr.mxu0 0.0
        %725 = vmatpush2.msra.mxu0 0.0
        %726 = vmatprep.subr.mxu0 0.0
        %727 = vmatpush2.msra.mxu0 0.0
        %728 = vmatprep.subr.mxu0 0.0
        %729 = vmatpush2.msra.mxu0 0.0
        %730 = vmatprep.subr.mxu0 0.0
        %731 = vmatpush2.msra.mxu0 0.0
        %732 = vmatprep.subr.mxu0 0.0
        %733 = vmatpush2.msra.mxu0 0.0
        %734 = vmatprep.subr.mxu0 0.0
        %735 = vmatpush2.msra.mxu0 0.0
        %736 = vmatprep.subr.mxu0 0.0
        %737 = vmatpush2.msra.mxu0 0.0
        %738 = vmatprep.subr.mxu0 0.0
        %739 = vmatpush2.msra.mxu0 0.0
        %740 = vmatprep.subr.mxu0 0.0
        %741 = vmatpush2.msra.mxu0 0.0
        %742 = vmatprep.mubr.f32.mxu0 0.0
        %743 = vmatmul.mubr.f32.gmra.mxu0 %v673
        %v744 = vpop.f32.mrf.mxu0
        %v745 = vadd.f32 0.0, %v744
        %v746 = vpop.f32.mrf.mxu0
        %747 = vmatprep.mubr.f32.mxu0 0.0
        %748 = vmatmul.mubr.f32.gmra.mxu0 %v676
        %v749 = vpop.f32.mrf.mxu0
        %v750 = vadd.f32 0.0, %v749
        %v751 = vpop.f32.mrf.mxu0
        %752 = vdwg.mxu0
        %v754 = vsel %vm590, %v562, 0
        %v757 = vsel %vm590, %v563, 0
        %759 = vmatprep.subr.mxu0 0.0
        %760 = vmatpush1.msra.mxu0 0.0
        %761 = vmatprep.subr.mxu0 0.0
        %762 = vmatpush1.msra.mxu0 0.0
        %763 = vmatprep.subr.mxu0 0.0
        %764 = vmatpush1.msra.mxu0 0.0
        %765 = vmatprep.subr.mxu0 0.0
        %766 = vmatpush1.msra.mxu0 0.0
        %767 = vmatprep.subr.mxu0 0.0
        %768 = vmatpush1.msra.mxu0 0.0
        %769 = vmatprep.subr.mxu0 0.0
        %770 = vmatpush1.msra.mxu0 0.0
        %771 = vmatprep.subr.mxu0 0.0
        %772 = vmatpush1.msra.mxu0 0.0
        %773 = vmatprep.subr.mxu0 0.0
        %774 = vmatpush1.msra.mxu0 0.0
        %775 = vmatprep.subr.mxu0 0.0
        %776 = vmatpush1.msra.mxu0 0.0
        %777 = vmatprep.subr.mxu0 0.0
        %778 = vmatpush1.msra.mxu0 0.0
        %779 = vmatprep.subr.mxu0 0.0
        %780 = vmatpush1.msra.mxu0 0.0
        %781 = vmatprep.subr.mxu0 0.0
        %782 = vmatpush1.msra.mxu0 0.0
        %783 = vmatprep.subr.mxu0 0.0
        %784 = vmatpush1.msra.mxu0 0.0
        %785 = vmatprep.subr.mxu0 0.0
        %786 = vmatpush1.msra.mxu0 0.0
        %787 = vmatprep.subr.mxu0 0.0
        %788 = vmatpush1.msra.mxu0 %v579
        %789 = vmatprep.subr.mxu0 0.0
        %790 = vmatpush1.msra.mxu0 %v578
        %791 = vmatprep.subr.mxu0 0.0
        %792 = vmatpush2.msra.mxu0 0.0
        %793 = vmatprep.subr.mxu0 0.0
        %794 = vmatpush2.msra.mxu0 0.0
        %795 = vmatprep.subr.mxu0 0.0
        %796 = vmatpush2.msra.mxu0 0.0
        %797 = vmatprep.subr.mxu0 0.0
        %798 = vmatpush2.msra.mxu0 0.0
        %799 = vmatprep.subr.mxu0 0.0
        %800 = vmatpush2.msra.mxu0 0.0
        %801 = vmatprep.subr.mxu0 0.0
        %802 = vmatpush2.msra.mxu0 0.0
        %803 = vmatprep.subr.mxu0 0.0
        %804 = vmatpush2.msra.mxu0 0.0
        %805 = vmatprep.subr.mxu0 0.0
        %806 = vmatpush2.msra.mxu0 0.0
        %807 = vmatprep.subr.mxu0 0.0
        %808 = vmatpush2.msra.mxu0 0.0
        %809 = vmatprep.subr.mxu0 0.0
        %810 = vmatpush2.msra.mxu0 0.0
        %811 = vmatprep.subr.mxu0 0.0
        %812 = vmatpush2.msra.mxu0 0.0
        %813 = vmatprep.subr.mxu0 0.0
        %814 = vmatpush2.msra.mxu0 0.0
        %815 = vmatprep.subr.mxu0 0.0
        %816 = vmatpush2.msra.mxu0 0.0
        %817 = vmatprep.subr.mxu0 0.0
        %818 = vmatpush2.msra.mxu0 0.0
        %819 = vmatprep.subr.mxu0 0.0
        %820 = vmatpush2.msra.mxu0 0.0
        %821 = vmatprep.subr.mxu0 0.0
        %822 = vmatpush2.msra.mxu0 0.0
        %823 = vmatprep.mubr.f32.mxu0 0.0
        %824 = vmatmul.mubr.f32.gmra.mxu0 %v754
        %v825 = vpop.f32.mrf.mxu0
        %v826 = vadd.f32 0.0, %v825
        %v827 = vpop.f32.mrf.mxu0
        %828 = vmatprep.mubr.f32.mxu0 0.0
        %829 = vmatmul.mubr.f32.gmra.mxu0 %v757
        %v830 = vpop.f32.mrf.mxu0
        %v831 = vadd.f32 0.0, %v830
        %v832 = vpop.f32.mrf.mxu0
        %833 = vdwg.mxu0
        %v835 = vsel %vm590, %v564, 0
        %v838 = vsel %vm590, %v565, 0
        %840 = vmatprep.subr.mxu0 0.0
        %841 = vmatpush1.msra.mxu0 0.0
        %842 = vmatprep.subr.mxu0 0.0
        %843 = vmatpush1.msra.mxu0 0.0
        %844 = vmatprep.subr.mxu0 0.0
        %845 = vmatpush1.msra.mxu0 0.0
        %846 = vmatprep.subr.mxu0 0.0
        %847 = vmatpush1.msra.mxu0 0.0
        %848 = vmatprep.subr.mxu0 0.0
        %849 = vmatpush1.msra.mxu0 0.0
        %850 = vmatprep.subr.mxu0 0.0
        %851 = vmatpush1.msra.mxu0 0.0
        %852 = vmatprep.subr.mxu0 0.0
        %853 = vmatpush1.msra.mxu0 0.0
        %854 = vmatprep.subr.mxu0 0.0
        %855 = vmatpush1.msra.mxu0 0.0
        %856 = vmatprep.subr.mxu0 0.0
        %857 = vmatpush1.msra.mxu0 0.0
        %858 = vmatprep.subr.mxu0 0.0
        %859 = vmatpush1.msra.mxu0 0.0
        %860 = vmatprep.subr.mxu0 0.0
        %861 = vmatpush1.msra.mxu0 0.0
        %862 = vmatprep.subr.mxu0 0.0
        %863 = vmatpush1.msra.mxu0 0.0
        %864 = vmatprep.subr.mxu0 0.0
        %865 = vmatpush1.msra.mxu0 0.0
        %866 = vmatprep.subr.mxu0 0.0
        %867 = vmatpush1.msra.mxu0 0.0
        %868 = vmatprep.subr.mxu0 0.0
        %869 = vmatpush1.msra.mxu0 %v581
        %870 = vmatprep.subr.mxu0 0.0
        %871 = vmatpush1.msra.mxu0 %v580
        %872 = vmatprep.subr.mxu0 0.0
        %873 = vmatpush2.msra.mxu0 0.0
        %874 = vmatprep.subr.mxu0 0.0
        %875 = vmatpush2.msra.mxu0 0.0
        %876 = vmatprep.subr.mxu0 0.0
        %877 = vmatpush2.msra.mxu0 0.0
        %878 = vmatprep.subr.mxu0 0.0
        %879 = vmatpush2.msra.mxu0 0.0
        %880 = vmatprep.subr.mxu0 0.0
        %881 = vmatpush2.msra.mxu0 0.0
        %882 = vmatprep.subr.mxu0 0.0
        %883 = vmatpush2.msra.mxu0 0.0
        %884 = vmatprep.subr.mxu0 0.0
        %885 = vmatpush2.msra.mxu0 0.0
        %886 = vmatprep.subr.mxu0 0.0
        %887 = vmatpush2.msra.mxu0 0.0
        %888 = vmatprep.subr.mxu0 0.0
        %889 = vmatpush2.msra.mxu0 0.0
        %890 = vmatprep.subr.mxu0 0.0
        %891 = vmatpush2.msra.mxu0 0.0
        %892 = vmatprep.subr.mxu0 0.0
        %893 = vmatpush2.msra.mxu0 0.0
        %894 = vmatprep.subr.mxu0 0.0
        %895 = vmatpush2.msra.mxu0 0.0
        %896 = vmatprep.subr.mxu0 0.0
        %897 = vmatpush2.msra.mxu0 0.0
        %898 = vmatprep.subr.mxu0 0.0
        %899 = vmatpush2.msra.mxu0 0.0
        %900 = vmatprep.subr.mxu0 0.0
        %901 = vmatpush2.msra.mxu0 0.0
        %902 = vmatprep.subr.mxu0 0.0
        %903 = vmatpush2.msra.mxu0 0.0
        %904 = vmatprep.mubr.f32.mxu0 0.0
        %905 = vmatmul.mubr.f32.gmra.mxu0 %v835
        %v906 = vpop.f32.mrf.mxu0
        %v907 = vadd.f32 0.0, %v906
        %v908 = vpop.f32.mrf.mxu0
        %909 = vmatprep.mubr.f32.mxu0 0.0
        %910 = vmatmul.mubr.f32.gmra.mxu0 %v838
        %v911 = vpop.f32.mrf.mxu0
        %v912 = vadd.f32 0.0, %v911
        %v913 = vpop.f32.mrf.mxu0
        %914 = vdwg.mxu0
        %v916 = vsel %vm590, %v566, 0
        %v919 = vsel %vm590, %v567, 0
        %921 = vmatprep.subr.mxu0 0.0
        %922 = vmatpush1.msra.mxu0 0.0
        %923 = vmatprep.subr.mxu0 0.0
        %924 = vmatpush1.msra.mxu0 0.0
        %925 = vmatprep.subr.mxu0 0.0
        %926 = vmatpush1.msra.mxu0 0.0
        %927 = vmatprep.subr.mxu0 0.0
        %928 = vmatpush1.msra.mxu0 0.0
        %929 = vmatprep.subr.mxu0 0.0
        %930 = vmatpush1.msra.mxu0 0.0
        %931 = vmatprep.subr.mxu0 0.0
        %932 = vmatpush1.msra.mxu0 0.0
        %933 = vmatprep.subr.mxu0 0.0
        %934 = vmatpush1.msra.mxu0 0.0
        %935 = vmatprep.subr.mxu0 0.0
        %936 = vmatpush1.msra.mxu0 0.0
        %937 = vmatprep.subr.mxu0 0.0
        %938 = vmatpush1.msra.mxu0 0.0
        %939 = vmatprep.subr.mxu0 0.0
        %940 = vmatpush1.msra.mxu0 0.0
        %941 = vmatprep.subr.mxu0 0.0
        %942 = vmatpush1.msra.mxu0 0.0
        %943 = vmatprep.subr.mxu0 0.0
        %944 = vmatpush1.msra.mxu0 0.0
        %945 = vmatprep.subr.mxu0 0.0
        %946 = vmatpush1.msra.mxu0 0.0
        %947 = vmatprep.subr.mxu0 0.0
        %948 = vmatpush1.msra.mxu0 0.0
        %949 = vmatprep.subr.mxu0 0.0
        %950 = vmatpush1.msra.mxu0 %v583
        %951 = vmatprep.subr.mxu0 0.0
        %952 = vmatpush1.msra.mxu0 %v582
        %953 = vmatprep.subr.mxu0 0.0
        %954 = vmatpush2.msra.mxu0 0.0
        %955 = vmatprep.subr.mxu0 0.0
        %956 = vmatpush2.msra.mxu0 0.0
        %957 = vmatprep.subr.mxu0 0.0
        %958 = vmatpush2.msra.mxu0 0.0
        %959 = vmatprep.subr.mxu0 0.0
        %960 = vmatpush2.msra.mxu0 0.0
        %961 = vmatprep.subr.mxu0 0.0
        %962 = vmatpush2.msra.mxu0 0.0
        %963 = vmatprep.subr.mxu0 0.0
        %964 = vmatpush2.msra.mxu0 0.0
        %965 = vmatprep.subr.mxu0 0.0
        %966 = vmatpush2.msra.mxu0 0.0
        %967 = vmatprep.subr.mxu0 0.0
        %968 = vmatpush2.msra.mxu0 0.0
        %969 = vmatprep.subr.mxu0 0.0
        %970 = vmatpush2.msra.mxu0 0.0
        %971 = vmatprep.subr.mxu0 0.0
        %972 = vmatpush2.msra.mxu0 0.0
        %973 = vmatprep.subr.mxu0 0.0
        %974 = vmatpush2.msra.mxu0 0.0
        %975 = vmatprep.subr.mxu0 0.0
        %976 = vmatpush2.msra.mxu0 0.0
        %977 = vmatprep.subr.mxu0 0.0
        %978 = vmatpush2.msra.mxu0 0.0
        %979 = vmatprep.subr.mxu0 0.0
        %980 = vmatpush2.msra.mxu0 0.0
        %981 = vmatprep.subr.mxu0 0.0
        %982 = vmatpush2.msra.mxu0 0.0
        %983 = vmatprep.subr.mxu0 0.0
        %984 = vmatpush2.msra.mxu0 0.0
        %985 = vmatprep.mubr.f32.mxu0 0.0
        %986 = vmatmul.mubr.f32.gmra.mxu0 %v916
        %v987 = vpop.f32.mrf.mxu0
        %v988 = vadd.f32 0.0, %v987
        %v989 = vpop.f32.mrf.mxu0
        %990 = vmatprep.mubr.f32.mxu0 0.0
        %991 = vmatmul.mubr.f32.gmra.mxu0 %v919
        %v992 = vpop.f32.mrf.mxu0
        %v993 = vadd.f32 0.0, %v992
        %v994 = vpop.f32.mrf.mxu0
        %995 = vdwg.mxu0
        %v997 = vsel %vm590, %v568, 0
        %v1000 = vsel %vm590, %v569, 0
        %1002 = vmatprep.subr.mxu0 0.0
        %1003 = vmatpush1.msra.mxu0 0.0
        %1004 = vmatprep.subr.mxu0 0.0
        %1005 = vmatpush1.msra.mxu0 0.0
        %1006 = vmatprep.subr.mxu0 0.0
        %1007 = vmatpush1.msra.mxu0 0.0
        %1008 = vmatprep.subr.mxu0 0.0
        %1009 = vmatpush1.msra.mxu0 0.0
        %1010 = vmatprep.subr.mxu0 0.0
        %1011 = vmatpush1.msra.mxu0 0.0
        %1012 = vmatprep.subr.mxu0 0.0
        %1013 = vmatpush1.msra.mxu0 0.0
        %1014 = vmatprep.subr.mxu0 0.0
        %1015 = vmatpush1.msra.mxu0 0.0
        %1016 = vmatprep.subr.mxu0 0.0
        %1017 = vmatpush1.msra.mxu0 0.0
        %1018 = vmatprep.subr.mxu0 0.0
        %1019 = vmatpush1.msra.mxu0 0.0
        %1020 = vmatprep.subr.mxu0 0.0
        %1021 = vmatpush1.msra.mxu0 0.0
        %1022 = vmatprep.subr.mxu0 0.0
        %1023 = vmatpush1.msra.mxu0 0.0
        %1024 = vmatprep.subr.mxu0 0.0
        %1025 = vmatpush1.msra.mxu0 0.0
        %1026 = vmatprep.subr.mxu0 0.0
        %1027 = vmatpush1.msra.mxu0 0.0
        %1028 = vmatprep.subr.mxu0 0.0
        %1029 = vmatpush1.msra.mxu0 0.0
        %1030 = vmatprep.subr.mxu0 0.0
        %1031 = vmatpush1.msra.mxu0 %v585
        %1032 = vmatprep.subr.mxu0 0.0
        %1033 = vmatpush1.msra.mxu0 %v584
        %1034 = vmatprep.subr.mxu0 0.0
        %1035 = vmatpush2.msra.mxu0 0.0
        %1036 = vmatprep.subr.mxu0 0.0
        %1037 = vmatpush2.msra.mxu0 0.0
        %1038 = vmatprep.subr.mxu0 0.0
        %1039 = vmatpush2.msra.mxu0 0.0
        %1040 = vmatprep.subr.mxu0 0.0
        %1041 = vmatpush2.msra.mxu0 0.0
        %1042 = vmatprep.subr.mxu0 0.0
        %1043 = vmatpush2.msra.mxu0 0.0
        %1044 = vmatprep.subr.mxu0 0.0
        %1045 = vmatpush2.msra.mxu0 0.0
        %1046 = vmatprep.subr.mxu0 0.0
        %1047 = vmatpush2.msra.mxu0 0.0
        %1048 = vmatprep.subr.mxu0 0.0
        %1049 = vmatpush2.msra.mxu0 0.0
        %1050 = vmatprep.subr.mxu0 0.0
        %1051 = vmatpush2.msra.mxu0 0.0
        %1052 = vmatprep.subr.mxu0 0.0
        %1053 = vmatpush2.msra.mxu0 0.0
        %1054 = vmatprep.subr.mxu0 0.0
        %1055 = vmatpush2.msra.mxu0 0.0
        %1056 = vmatprep.subr.mxu0 0.0
        %1057 = vmatpush2.msra.mxu0 0.0
        %1058 = vmatprep.subr.mxu0 0.0
        %1059 = vmatpush2.msra.mxu0 0.0
        %1060 = vmatprep.subr.mxu0 0.0
        %1061 = vmatpush2.msra.mxu0 0.0
        %1062 = vmatprep.subr.mxu0 0.0
        %1063 = vmatpush2.msra.mxu0 0.0
        %1064 = vmatprep.subr.mxu0 0.0
        %1065 = vmatpush2.msra.mxu0 0.0
        %1066 = vmatprep.mubr.f32.mxu0 0.0
        %1067 = vmatmul.mubr.f32.gmra.mxu0 %v997
        %v1068 = vpop.f32.mrf.mxu0
        %v1069 = vadd.f32 0.0, %v1068
        %v1070 = vpop.f32.mrf.mxu0
        %1071 = vmatprep.mubr.f32.mxu0 0.0
        %1072 = vmatmul.mubr.f32.gmra.mxu0 %v1000
        %v1073 = vpop.f32.mrf.mxu0
        %v1074 = vadd.f32 0.0, %v1073
        %v1075 = vpop.f32.mrf.mxu0
        %1076 = vdwg.mxu0
        %v1078 = vsel %vm590, %v570, 0
        %v1081 = vsel %vm590, %v571, 0
        %1083 = vmatprep.subr.mxu0 0.0
        %1084 = vmatpush1.msra.mxu0 0.0
        %1085 = vmatprep.subr.mxu0 0.0
        %1086 = vmatpush1.msra.mxu0 0.0
        %1087 = vmatprep.subr.mxu0 0.0
        %1088 = vmatpush1.msra.mxu0 0.0
        %1089 = vmatprep.subr.mxu0 0.0
        %1090 = vmatpush1.msra.mxu0 0.0
        %1091 = vmatprep.subr.mxu0 0.0
        %1092 = vmatpush1.msra.mxu0 0.0
        %1093 = vmatprep.subr.mxu0 0.0
        %1094 = vmatpush1.msra.mxu0 0.0
        %1095 = vmatprep.subr.mxu0 0.0
        %1096 = vmatpush1.msra.mxu0 0.0
        %1097 = vmatprep.subr.mxu0 0.0
        %1098 = vmatpush1.msra.mxu0 0.0
        %1099 = vmatprep.subr.mxu0 0.0
        %1100 = vmatpush1.msra.mxu0 0.0
        %1101 = vmatprep.subr.mxu0 0.0
        %1102 = vmatpush1.msra.mxu0 0.0
        %1103 = vmatprep.subr.mxu0 0.0
        %1104 = vmatpush1.msra.mxu0 0.0
        %1105 = vmatprep.subr.mxu0 0.0
        %1106 = vmatpush1.msra.mxu0 0.0
        %1107 = vmatprep.subr.mxu0 0.0
        %1108 = vmatpush1.msra.mxu0 0.0
        %1109 = vmatprep.subr.mxu0 0.0
        %1110 = vmatpush1.msra.mxu0 0.0
        %1111 = vmatprep.subr.mxu0 0.0
        %1112 = vmatpush1.msra.mxu0 %v587
        %1113 = vmatprep.subr.mxu0 0.0
        %1114 = vmatpush1.msra.mxu0 %v586
        %1115 = vmatprep.subr.mxu0 0.0
        %1116 = vmatpush2.msra.mxu0 0.0
        %1117 = vmatprep.subr.mxu0 0.0
        %1118 = vmatpush2.msra.mxu0 0.0
        %1119 = vmatprep.subr.mxu0 0.0
        %1120 = vmatpush2.msra.mxu0 0.0
        %1121 = vmatprep.subr.mxu0 0.0
        %1122 = vmatpush2.msra.mxu0 0.0
        %1123 = vmatprep.subr.mxu0 0.0
        %1124 = vmatpush2.msra.mxu0 0.0
        %1125 = vmatprep.subr.mxu0 0.0
        %1126 = vmatpush2.msra.mxu0 0.0
        %1127 = vmatprep.subr.mxu0 0.0
        %1128 = vmatpush2.msra.mxu0 0.0
        %1129 = vmatprep.subr.mxu0 0.0
        %1130 = vmatpush2.msra.mxu0 0.0
        %1131 = vmatprep.subr.mxu0 0.0
        %1132 = vmatpush2.msra.mxu0 0.0
        %1133 = vmatprep.subr.mxu0 0.0
        %1134 = vmatpush2.msra.mxu0 0.0
        %1135 = vmatprep.subr.mxu0 0.0
        %1136 = vmatpush2.msra.mxu0 0.0
        %1137 = vmatprep.subr.mxu0 0.0
        %1138 = vmatpush2.msra.mxu0 0.0
        %1139 = vmatprep.subr.mxu0 0.0
        %1140 = vmatpush2.msra.mxu0 0.0
        %1141 = vmatprep.subr.mxu0 0.0
        %1142 = vmatpush2.msra.mxu0 0.0
        %1143 = vmatprep.subr.mxu0 0.0
        %1144 = vmatpush2.msra.mxu0 0.0
        %1145 = vmatprep.subr.mxu0 0.0
        %1146 = vmatpush2.msra.mxu0 0.0
        %1147 = vmatprep.mubr.f32.mxu0 0.0
        %1148 = vmatmul.mubr.f32.gmra.mxu0 %v1078
        %v1149 = vpop.f32.mrf.mxu0
        %v1150 = vadd.f32 0.0, %v1149
        %v1151 = vpop.f32.mrf.mxu0
        %1152 = vmatprep.mubr.f32.mxu0 0.0
        %1153 = vmatmul.mubr.f32.gmra.mxu0 %v1081
        %v1154 = vpop.f32.mrf.mxu0
        %v1155 = vadd.f32 0.0, %v1154
        %v1156 = vpop.f32.mrf.mxu0
        %1157 = vdwg.mxu0
        %v1159 = vsel %vm590, %v572, 0
        %v1162 = vsel %vm590, %v573, 0
        %1164 = vmatprep.subr.mxu0 0.0
        %1165 = vmatpush1.msra.mxu0 0.0
        %1166 = vmatprep.subr.mxu0 0.0
        %1167 = vmatpush1.msra.mxu0 0.0
        %1168 = vmatprep.subr.mxu0 0.0
        %1169 = vmatpush1.msra.mxu0 0.0
        %1170 = vmatprep.subr.mxu0 0.0
        %1171 = vmatpush1.msra.mxu0 0.0
        %1172 = vmatprep.subr.mxu0 0.0
        %1173 = vmatpush1.msra.mxu0 0.0
        %1174 = vmatprep.subr.mxu0 0.0
        %1175 = vmatpush1.msra.mxu0 0.0
        %1176 = vmatprep.subr.mxu0 0.0
        %1177 = vmatpush1.msra.mxu0 0.0
        %1178 = vmatprep.subr.mxu0 0.0
        %1179 = vmatpush1.msra.mxu0 0.0
        %1180 = vmatprep.subr.mxu0 0.0
        %1181 = vmatpush1.msra.mxu0 0.0
        %1182 = vmatprep.subr.mxu0 0.0
        %1183 = vmatpush1.msra.mxu0 0.0
        %1184 = vmatprep.subr.mxu0 0.0
        %1185 = vmatpush1.msra.mxu0 0.0
        %1186 = vmatprep.subr.mxu0 0.0
        %1187 = vmatpush1.msra.mxu0 0.0
        %1188 = vmatprep.subr.mxu0 0.0
        %1189 = vmatpush1.msra.mxu0 0.0
        %1190 = vmatprep.subr.mxu0 0.0
        %1191 = vmatpush1.msra.mxu0 0.0
        %1192 = vmatprep.subr.mxu0 0.0
        %1193 = vmatpush1.msra.mxu0 %v589
        %1194 = vmatprep.subr.mxu0 0.0
        %1195 = vmatpush1.msra.mxu0 %v588
        %1196 = vmatprep.subr.mxu0 0.0
        %1197 = vmatpush2.msra.mxu0 0.0
        %1198 = vmatprep.subr.mxu0 0.0
        %1199 = vmatpush2.msra.mxu0 0.0
        %1200 = vmatprep.subr.mxu0 0.0
        %1201 = vmatpush2.msra.mxu0 0.0
        %1202 = vmatprep.subr.mxu0 0.0
        %1203 = vmatpush2.msra.mxu0 0.0
        %1204 = vmatprep.subr.mxu0 0.0
        %1205 = vmatpush2.msra.mxu0 0.0
        %1206 = vmatprep.subr.mxu0 0.0
        %1207 = vmatpush2.msra.mxu0 0.0
        %1208 = vmatprep.subr.mxu0 0.0
        %1209 = vmatpush2.msra.mxu0 0.0
        %1210 = vmatprep.subr.mxu0 0.0
        %1211 = vmatpush2.msra.mxu0 0.0
        %1212 = vmatprep.subr.mxu0 0.0
        %1213 = vmatpush2.msra.mxu0 0.0
        %1214 = vmatprep.subr.mxu0 0.0
        %1215 = vmatpush2.msra.mxu0 0.0
        %1216 = vmatprep.subr.mxu0 0.0
        %1217 = vmatpush2.msra.mxu0 0.0
        %1218 = vmatprep.subr.mxu0 0.0
        %1219 = vmatpush2.msra.mxu0 0.0
        %1220 = vmatprep.subr.mxu0 0.0
        %1221 = vmatpush2.msra.mxu0 0.0
        %1222 = vmatprep.subr.mxu0 0.0
        %1223 = vmatpush2.msra.mxu0 0.0
        %1224 = vmatprep.subr.mxu0 0.0
        %1225 = vmatpush2.msra.mxu0 0.0
        %1226 = vmatprep.subr.mxu0 0.0
        %1227 = vmatpush2.msra.mxu0 0.0
        %1228 = vmatprep.mubr.f32.mxu0 0.0
        %1229 = vmatmul.mubr.f32.gmra.mxu0 %v1159
        %v1230 = vpop.f32.mrf.mxu0
        %v1231 = vadd.f32 0.0, %v1230
        %v1232 = vpop.f32.mrf.mxu0
        %1233 = vmatprep.mubr.f32.mxu0 0.0
        %1234 = vmatmul.mubr.f32.gmra.mxu0 %v1162
        %v1235 = vpop.f32.mrf.mxu0
        %v1236 = vadd.f32 0.0, %v1235
        %v1237 = vpop.f32.mrf.mxu0
        %1238 = vdwg.mxu0
        %v1239 = vld [vmem:[%s4] sm:$0xff]
        %v1240 = vld [vmem:[%s4 + $0x8] sm:$0xff]
        %v1241 = vld [vmem:[%s4 + $0x10] sm:$0xff]
        %v1242 = vld [vmem:[%s4 + $0x18] sm:$0xff]
        %v1243 = vld [vmem:[%s4 + $0x20] sm:$0xff]
        %v1244 = vld [vmem:[%s4 + $0x28] sm:$0xff]
        %v1245 = vld [vmem:[%s4 + $0x30] sm:$0xff]
        %v1246 = vld [vmem:[%s4 + $0x38] sm:$0xff]
        %v1247 = vld [vmem:[%s4 + $0x40] sm:$0xff]
        %v1248 = vld [vmem:[%s4 + $0x48] sm:$0xff]
        %v1249 = vld [vmem:[%s4 + $0x50] sm:$0xff]
        %v1250 = vld [vmem:[%s4 + $0x58] sm:$0xff]
        %v1251 = vld [vmem:[%s4 + $0x60] sm:$0xff]
        %v1252 = vld [vmem:[%s4 + $0x68] sm:$0xff]
        %v1253 = vld [vmem:[%s4 + $0x70] sm:$0xff]
        %v1254 = vld [vmem:[%s4 + $0x78] sm:$0xff]
        %v1255 = vld [vmem:[%s4 + $0x80] sm:$0xff]
        %v1256 = vld [vmem:[%s4 + $0x88] sm:$0xff]
        %v1257 = vld [vmem:[%s4 + $0x90] sm:$0xff]
        %v1258 = vld [vmem:[%s4 + $0x98] sm:$0xff]
        %v1259 = vld [vmem:[%s4 + $0xa0] sm:$0xff]
        %v1260 = vld [vmem:[%s4 + $0xa8] sm:$0xff]
        %v1261 = vld [vmem:[%s4 + $0xb0] sm:$0xff]
        %v1262 = vld [vmem:[%s4 + $0xb8] sm:$0xff]
        %v1263 = vld [vmem:[%s4 + $0xc0] sm:$0xff]
        %v1264 = vld [vmem:[%s4 + $0xc8] sm:$0xff]
        %v1265 = vld [vmem:[%s4 + $0xd0] sm:$0xff]
        %v1266 = vld [vmem:[%s4 + $0xd8] sm:$0xff]
        %v1267 = vld [vmem:[%s4 + $0xe0] sm:$0xff]
        %v1268 = vld [vmem:[%s4 + $0xe8] sm:$0xff]
        %v1269 = vld [vmem:[%s4 + $0xf0] sm:$0xff]
        %v1270 = vld [vmem:[%s4 + $0xf8] sm:$0xff]
        %v1272 = vsel %vm590, %v1239, 0
        %v1275 = vsel %vm590, %v1240, 0
        %v1278 = vsel %vm590, %v1241, 0
        %v1281 = vsel %vm590, %v1242, 0
        %1283 = vmatprep.subr.mxu0 0.0
        %1284 = vmatpush1.msra.mxu0 0.0
        %1285 = vmatprep.subr.mxu0 0.0
        %1286 = vmatpush1.msra.mxu0 0.0
        %1287 = vmatprep.subr.mxu0 0.0
        %1288 = vmatpush1.msra.mxu0 0.0
        %1289 = vmatprep.subr.mxu0 0.0
        %1290 = vmatpush1.msra.mxu0 0.0
        %1291 = vmatprep.subr.mxu0 0.0
        %1292 = vmatpush1.msra.mxu0 0.0
        %1293 = vmatprep.subr.mxu0 0.0
        %1294 = vmatpush1.msra.mxu0 0.0
        %1295 = vmatprep.subr.mxu0 0.0
        %1296 = vmatpush1.msra.mxu0 0.0
        %1297 = vmatprep.subr.mxu0 0.0
        %1298 = vmatpush1.msra.mxu0 0.0
        %1299 = vmatprep.subr.mxu0 0.0
        %1300 = vmatpush1.msra.mxu0 0.0
        %1301 = vmatprep.subr.mxu0 0.0
        %1302 = vmatpush1.msra.mxu0 0.0
        %1303 = vmatprep.subr.mxu0 0.0
        %1304 = vmatpush1.msra.mxu0 0.0
        %1305 = vmatprep.subr.mxu0 0.0
        %1306 = vmatpush1.msra.mxu0 0.0
        %1307 = vmatprep.subr.mxu0 0.0
        %1308 = vmatpush1.msra.mxu0 0.0
        %1309 = vmatprep.subr.mxu0 0.0
        %1310 = vmatpush1.msra.mxu0 0.0
        %1311 = vmatprep.subr.mxu0 0.0
        %1312 = vmatpush1.msra.mxu0 %v669
        %1313 = vmatprep.subr.mxu0 0.0
        %1314 = vmatpush1.msra.mxu0 %v664
        %1315 = vmatprep.subr.mxu0 0.0
        %1316 = vmatpush2.msra.mxu0 0.0
        %1317 = vmatprep.subr.mxu0 0.0
        %1318 = vmatpush2.msra.mxu0 0.0
        %1319 = vmatprep.subr.mxu0 0.0
        %1320 = vmatpush2.msra.mxu0 0.0
        %1321 = vmatprep.subr.mxu0 0.0
        %1322 = vmatpush2.msra.mxu0 0.0
        %1323 = vmatprep.subr.mxu0 0.0
        %1324 = vmatpush2.msra.mxu0 0.0
        %1325 = vmatprep.subr.mxu0 0.0
        %1326 = vmatpush2.msra.mxu0 0.0
        %1327 = vmatprep.subr.mxu0 0.0
        %1328 = vmatpush2.msra.mxu0 0.0
        %1329 = vmatprep.subr.mxu0 0.0
        %1330 = vmatpush2.msra.mxu0 0.0
        %1331 = vmatprep.subr.mxu0 0.0
        %1332 = vmatpush2.msra.mxu0 0.0
        %1333 = vmatprep.subr.mxu0 0.0
        %1334 = vmatpush2.msra.mxu0 0.0
        %1335 = vmatprep.subr.mxu0 0.0
        %1336 = vmatpush2.msra.mxu0 0.0
        %1337 = vmatprep.subr.mxu0 0.0
        %1338 = vmatpush2.msra.mxu0 0.0
        %1339 = vmatprep.subr.mxu0 0.0
        %1340 = vmatpush2.msra.mxu0 0.0
        %1341 = vmatprep.subr.mxu0 0.0
        %1342 = vmatpush2.msra.mxu0 0.0
        %1343 = vmatprep.subr.mxu0 0.0
        %1344 = vmatpush2.msra.mxu0 0.0
        %1345 = vmatprep.subr.mxu0 0.0
        %1346 = vmatpush2.msra.mxu0 0.0
        %1347 = vmatprep.mubr.f32.mxu0 0.0
        %1348 = vmatmul.mubr.f32.gmra.mxu0 %v1272
        %v1349 = vpop.f32.mrf.mxu0
        %v1350 = vadd.f32 0.0, %v1349
        %v1351 = vpop.f32.mrf.mxu0
        %1352 = vmatprep.mubr.f32.mxu0 0.0
        %1353 = vmatmul.mubr.f32.gmra.mxu0 %v1275
        %v1354 = vpop.f32.mrf.mxu0
        %v1355 = vadd.f32 0.0, %v1354
        %v1356 = vpop.f32.mrf.mxu0
        %1357 = vmatprep.mubr.f32.mxu0 0.0
        %1358 = vmatmul.mubr.f32.gmra.mxu0 %v1278
        %v1359 = vpop.f32.mrf.mxu0
        %v1360 = vadd.f32 0.0, %v1359
        %v1361 = vpop.f32.mrf.mxu0
        %1362 = vmatprep.mubr.f32.mxu0 0.0
        %1363 = vmatmul.mubr.f32.gmra.mxu0 %v1281
        %v1364 = vpop.f32.mrf.mxu0
        %v1365 = vadd.f32 0.0, %v1364
        %v1366 = vpop.f32.mrf.mxu0
        %1367 = vdwg.mxu0
        %v1369 = vsel %vm590, %v1243, 0
        %v1372 = vsel %vm590, %v1244, 0
        %v1375 = vsel %vm590, %v1245, 0
        %v1378 = vsel %vm590, %v1246, 0
        %1380 = vmatprep.subr.mxu0 0.0
        %1381 = vmatpush1.msra.mxu0 0.0
        %1382 = vmatprep.subr.mxu0 0.0
        %1383 = vmatpush1.msra.mxu0 0.0
        %1384 = vmatprep.subr.mxu0 0.0
        %1385 = vmatpush1.msra.mxu0 0.0
        %1386 = vmatprep.subr.mxu0 0.0
        %1387 = vmatpush1.msra.mxu0 0.0
        %1388 = vmatprep.subr.mxu0 0.0
        %1389 = vmatpush1.msra.mxu0 0.0
        %1390 = vmatprep.subr.mxu0 0.0
        %1391 = vmatpush1.msra.mxu0 0.0
        %1392 = vmatprep.subr.mxu0 0.0
        %1393 = vmatpush1.msra.mxu0 0.0
        %1394 = vmatprep.subr.mxu0 0.0
        %1395 = vmatpush1.msra.mxu0 0.0
        %1396 = vmatprep.subr.mxu0 0.0
        %1397 = vmatpush1.msra.mxu0 0.0
        %1398 = vmatprep.subr.mxu0 0.0
        %1399 = vmatpush1.msra.mxu0 0.0
        %1400 = vmatprep.subr.mxu0 0.0
        %1401 = vmatpush1.msra.mxu0 0.0
        %1402 = vmatprep.subr.mxu0 0.0
        %1403 = vmatpush1.msra.mxu0 0.0
        %1404 = vmatprep.subr.mxu0 0.0
        %1405 = vmatpush1.msra.mxu0 0.0
        %1406 = vmatprep.subr.mxu0 0.0
        %1407 = vmatpush1.msra.mxu0 0.0
        %1408 = vmatprep.subr.mxu0 0.0
        %1409 = vmatpush1.msra.mxu0 %v750
        %1410 = vmatprep.subr.mxu0 0.0
        %1411 = vmatpush1.msra.mxu0 %v745
        %1412 = vmatprep.subr.mxu0 0.0
        %1413 = vmatpush2.msra.mxu0 0.0
        %1414 = vmatprep.subr.mxu0 0.0
        %1415 = vmatpush2.msra.mxu0 0.0
        %1416 = vmatprep.subr.mxu0 0.0
        %1417 = vmatpush2.msra.mxu0 0.0
        %1418 = vmatprep.subr.mxu0 0.0
        %1419 = vmatpush2.msra.mxu0 0.0
        %1420 = vmatprep.subr.mxu0 0.0
        %1421 = vmatpush2.msra.mxu0 0.0
        %1422 = vmatprep.subr.mxu0 0.0
        %1423 = vmatpush2.msra.mxu0 0.0
        %1424 = vmatprep.subr.mxu0 0.0
        %1425 = vmatpush2.msra.mxu0 0.0
        %1426 = vmatprep.subr.mxu0 0.0
        %1427 = vmatpush2.msra.mxu0 0.0
        %1428 = vmatprep.subr.mxu0 0.0
        %1429 = vmatpush2.msra.mxu0 0.0
        %1430 = vmatprep.subr.mxu0 0.0
        %1431 = vmatpush2.msra.mxu0 0.0
        %1432 = vmatprep.subr.mxu0 0.0
        %1433 = vmatpush2.msra.mxu0 0.0
        %1434 = vmatprep.subr.mxu0 0.0
        %1435 = vmatpush2.msra.mxu0 0.0
        %1436 = vmatprep.subr.mxu0 0.0
        %1437 = vmatpush2.msra.mxu0 0.0
        %1438 = vmatprep.subr.mxu0 0.0
        %1439 = vmatpush2.msra.mxu0 0.0
        %1440 = vmatprep.subr.mxu0 0.0
        %1441 = vmatpush2.msra.mxu0 0.0
        %1442 = vmatprep.subr.mxu0 0.0
        %1443 = vmatpush2.msra.mxu0 0.0
        %1444 = vmatprep.mubr.f32.mxu0 0.0
        %1445 = vmatmul.mubr.f32.gmra.mxu0 %v1369
        %v1446 = vpop.f32.mrf.mxu0
        %v1447 = vadd.f32 0.0, %v1446
        %v1448 = vpop.f32.mrf.mxu0
        %1449 = vmatprep.mubr.f32.mxu0 0.0
        %1450 = vmatmul.mubr.f32.gmra.mxu0 %v1372
        %v1451 = vpop.f32.mrf.mxu0
        %v1452 = vadd.f32 0.0, %v1451
        %v1453 = vpop.f32.mrf.mxu0
        %1454 = vmatprep.mubr.f32.mxu0 0.0
        %1455 = vmatmul.mubr.f32.gmra.mxu0 %v1375
        %v1456 = vpop.f32.mrf.mxu0
        %v1457 = vadd.f32 0.0, %v1456
        %v1458 = vpop.f32.mrf.mxu0
        %1459 = vmatprep.mubr.f32.mxu0 0.0
        %1460 = vmatmul.mubr.f32.gmra.mxu0 %v1378
        %v1461 = vpop.f32.mrf.mxu0
        %v1462 = vadd.f32 0.0, %v1461
        %v1463 = vpop.f32.mrf.mxu0
        %1464 = vdwg.mxu0
        %v1466 = vsel %vm590, %v1247, 0
        %v1469 = vsel %vm590, %v1248, 0
        %v1472 = vsel %vm590, %v1249, 0
        %v1475 = vsel %vm590, %v1250, 0
        %1477 = vmatprep.subr.mxu0 0.0
        %1478 = vmatpush1.msra.mxu0 0.0
        %1479 = vmatprep.subr.mxu0 0.0
        %1480 = vmatpush1.msra.mxu0 0.0
        %1481 = vmatprep.subr.mxu0 0.0
        %1482 = vmatpush1.msra.mxu0 0.0
        %1483 = vmatprep.subr.mxu0 0.0
        %1484 = vmatpush1.msra.mxu0 0.0
        %1485 = vmatprep.subr.mxu0 0.0
        %1486 = vmatpush1.msra.mxu0 0.0
        %1487 = vmatprep.subr.mxu0 0.0
        %1488 = vmatpush1.msra.mxu0 0.0
        %1489 = vmatprep.subr.mxu0 0.0
        %1490 = vmatpush1.msra.mxu0 0.0
        %1491 = vmatprep.subr.mxu0 0.0
        %1492 = vmatpush1.msra.mxu0 0.0
        %1493 = vmatprep.subr.mxu0 0.0
        %1494 = vmatpush1.msra.mxu0 0.0
        %1495 = vmatprep.subr.mxu0 0.0
        %1496 = vmatpush1.msra.mxu0 0.0
        %1497 = vmatprep.subr.mxu0 0.0
        %1498 = vmatpush1.msra.mxu0 0.0
        %1499 = vmatprep.subr.mxu0 0.0
        %1500 = vmatpush1.msra.mxu0 0.0
        %1501 = vmatprep.subr.mxu0 0.0
        %1502 = vmatpush1.msra.mxu0 0.0
        %1503 = vmatprep.subr.mxu0 0.0
        %1504 = vmatpush1.msra.mxu0 0.0
        %1505 = vmatprep.subr.mxu0 0.0
        %1506 = vmatpush1.msra.mxu0 %v831
        %1507 = vmatprep.subr.mxu0 0.0
        %1508 = vmatpush1.msra.mxu0 %v826
        %1509 = vmatprep.subr.mxu0 0.0
        %1510 = vmatpush2.msra.mxu0 0.0
        %1511 = vmatprep.subr.mxu0 0.0
        %1512 = vmatpush2.msra.mxu0 0.0
        %1513 = vmatprep.subr.mxu0 0.0
        %1514 = vmatpush2.msra.mxu0 0.0
        %1515 = vmatprep.subr.mxu0 0.0
        %1516 = vmatpush2.msra.mxu0 0.0
        %1517 = vmatprep.subr.mxu0 0.0
        %1518 = vmatpush2.msra.mxu0 0.0
        %1519 = vmatprep.subr.mxu0 0.0
        %1520 = vmatpush2.msra.mxu0 0.0
        %1521 = vmatprep.subr.mxu0 0.0
        %1522 = vmatpush2.msra.mxu0 0.0
        %1523 = vmatprep.subr.mxu0 0.0
        %1524 = vmatpush2.msra.mxu0 0.0
        %1525 = vmatprep.subr.mxu0 0.0
        %1526 = vmatpush2.msra.mxu0 0.0
        %1527 = vmatprep.subr.mxu0 0.0
        %1528 = vmatpush2.msra.mxu0 0.0
        %1529 = vmatprep.subr.mxu0 0.0
        %1530 = vmatpush2.msra.mxu0 0.0
        %1531 = vmatprep.subr.mxu0 0.0
        %1532 = vmatpush2.msra.mxu0 0.0
        %1533 = vmatprep.subr.mxu0 0.0
        %1534 = vmatpush2.msra.mxu0 0.0
        %1535 = vmatprep.subr.mxu0 0.0
        %1536 = vmatpush2.msra.mxu0 0.0
        %1537 = vmatprep.subr.mxu0 0.0
        %1538 = vmatpush2.msra.mxu0 0.0
        %1539 = vmatprep.subr.mxu0 0.0
        %1540 = vmatpush2.msra.mxu0 0.0
        %1541 = vmatprep.mubr.f32.mxu0 0.0
        %1542 = vmatmul.mubr.f32.gmra.mxu0 %v1466
        %v1543 = vpop.f32.mrf.mxu0
        %v1544 = vadd.f32 0.0, %v1543
        %v1545 = vpop.f32.mrf.mxu0
        %1546 = vmatprep.mubr.f32.mxu0 0.0
        %1547 = vmatmul.mubr.f32.gmra.mxu0 %v1469
        %v1548 = vpop.f32.mrf.mxu0
        %v1549 = vadd.f32 0.0, %v1548
        %v1550 = vpop.f32.mrf.mxu0
        %1551 = vmatprep.mubr.f32.mxu0 0.0
        %1552 = vmatmul.mubr.f32.gmra.mxu0 %v1472
        %v1553 = vpop.f32.mrf.mxu0
        %v1554 = vadd.f32 0.0, %v1553
        %v1555 = vpop.f32.mrf.mxu0
        %1556 = vmatprep.mubr.f32.mxu0 0.0
        %1557 = vmatmul.mubr.f32.gmra.mxu0 %v1475
        %v1558 = vpop.f32.mrf.mxu0
        %v1559 = vadd.f32 0.0, %v1558
        %v1560 = vpop.f32.mrf.mxu0
        %1561 = vdwg.mxu0
        %v1563 = vsel %vm590, %v1251, 0
        %v1566 = vsel %vm590, %v1252, 0
        %v1569 = vsel %vm590, %v1253, 0
        %v1572 = vsel %vm590, %v1254, 0
        %1574 = vmatprep.subr.mxu0 0.0
        %1575 = vmatpush1.msra.mxu0 0.0
        %1576 = vmatprep.subr.mxu0 0.0
        %1577 = vmatpush1.msra.mxu0 0.0
        %1578 = vmatprep.subr.mxu0 0.0
        %1579 = vmatpush1.msra.mxu0 0.0
        %1580 = vmatprep.subr.mxu0 0.0
        %1581 = vmatpush1.msra.mxu0 0.0
        %1582 = vmatprep.subr.mxu0 0.0
        %1583 = vmatpush1.msra.mxu0 0.0
        %1584 = vmatprep.subr.mxu0 0.0
        %1585 = vmatpush1.msra.mxu0 0.0
        %1586 = vmatprep.subr.mxu0 0.0
        %1587 = vmatpush1.msra.mxu0 0.0
        %1588 = vmatprep.subr.mxu0 0.0
        %1589 = vmatpush1.msra.mxu0 0.0
        %1590 = vmatprep.subr.mxu0 0.0
        %1591 = vmatpush1.msra.mxu0 0.0
        %1592 = vmatprep.subr.mxu0 0.0
        %1593 = vmatpush1.msra.mxu0 0.0
        %1594 = vmatprep.subr.mxu0 0.0
        %1595 = vmatpush1.msra.mxu0 0.0
        %1596 = vmatprep.subr.mxu0 0.0
        %1597 = vmatpush1.msra.mxu0 0.0
        %1598 = vmatprep.subr.mxu0 0.0
        %1599 = vmatpush1.msra.mxu0 0.0
        %1600 = vmatprep.subr.mxu0 0.0
        %1601 = vmatpush1.msra.mxu0 0.0
        %1602 = vmatprep.subr.mxu0 0.0
        %1603 = vmatpush1.msra.mxu0 %v912
        %1604 = vmatprep.subr.mxu0 0.0
        %1605 = vmatpush1.msra.mxu0 %v907
        %1606 = vmatprep.subr.mxu0 0.0
        %1607 = vmatpush2.msra.mxu0 0.0
        %1608 = vmatprep.subr.mxu0 0.0
        %1609 = vmatpush2.msra.mxu0 0.0
        %1610 = vmatprep.subr.mxu0 0.0
        %1611 = vmatpush2.msra.mxu0 0.0
        %1612 = vmatprep.subr.mxu0 0.0
        %1613 = vmatpush2.msra.mxu0 0.0
        %1614 = vmatprep.subr.mxu0 0.0
        %1615 = vmatpush2.msra.mxu0 0.0
        %1616 = vmatprep.subr.mxu0 0.0
        %1617 = vmatpush2.msra.mxu0 0.0
        %1618 = vmatprep.subr.mxu0 0.0
        %1619 = vmatpush2.msra.mxu0 0.0
        %1620 = vmatprep.subr.mxu0 0.0
        %1621 = vmatpush2.msra.mxu0 0.0
        %1622 = vmatprep.subr.mxu0 0.0
        %1623 = vmatpush2.msra.mxu0 0.0
        %1624 = vmatprep.subr.mxu0 0.0
        %1625 = vmatpush2.msra.mxu0 0.0
        %1626 = vmatprep.subr.mxu0 0.0
        %1627 = vmatpush2.msra.mxu0 0.0
        %1628 = vmatprep.subr.mxu0 0.0
        %1629 = vmatpush2.msra.mxu0 0.0
        %1630 = vmatprep.subr.mxu0 0.0
        %1631 = vmatpush2.msra.mxu0 0.0
        %1632 = vmatprep.subr.mxu0 0.0
        %1633 = vmatpush2.msra.mxu0 0.0
        %1634 = vmatprep.subr.mxu0 0.0
        %1635 = vmatpush2.msra.mxu0 0.0
        %1636 = vmatprep.subr.mxu0 0.0
        %1637 = vmatpush2.msra.mxu0 0.0
        %1638 = vmatprep.mubr.f32.mxu0 0.0
        %1639 = vmatmul.mubr.f32.gmra.mxu0 %v1563
        %v1640 = vpop.f32.mrf.mxu0
        %v1641 = vadd.f32 0.0, %v1640
        %v1642 = vpop.f32.mrf.mxu0
        %1643 = vmatprep.mubr.f32.mxu0 0.0
        %1644 = vmatmul.mubr.f32.gmra.mxu0 %v1566
        %v1645 = vpop.f32.mrf.mxu0
        %v1646 = vadd.f32 0.0, %v1645
        %v1647 = vpop.f32.mrf.mxu0
        %1648 = vmatprep.mubr.f32.mxu0 0.0
        %1649 = vmatmul.mubr.f32.gmra.mxu0 %v1569
        %v1650 = vpop.f32.mrf.mxu0
        %v1651 = vadd.f32 0.0, %v1650
        %v1652 = vpop.f32.mrf.mxu0
        %1653 = vmatprep.mubr.f32.mxu0 0.0
        %1654 = vmatmul.mubr.f32.gmra.mxu0 %v1572
        %v1655 = vpop.f32.mrf.mxu0
        %v1656 = vadd.f32 0.0, %v1655
        %v1657 = vpop.f32.mrf.mxu0
        %1658 = vdwg.mxu0
        %v1660 = vsel %vm590, %v1255, 0
        %v1663 = vsel %vm590, %v1256, 0
        %v1666 = vsel %vm590, %v1257, 0
        %v1669 = vsel %vm590, %v1258, 0
        %1671 = vmatprep.subr.mxu0 0.0
        %1672 = vmatpush1.msra.mxu0 0.0
        %1673 = vmatprep.subr.mxu0 0.0
        %1674 = vmatpush1.msra.mxu0 0.0
        %1675 = vmatprep.subr.mxu0 0.0
        %1676 = vmatpush1.msra.mxu0 0.0
        %1677 = vmatprep.subr.mxu0 0.0
        %1678 = vmatpush1.msra.mxu0 0.0
        %1679 = vmatprep.subr.mxu0 0.0
        %1680 = vmatpush1.msra.mxu0 0.0
        %1681 = vmatprep.subr.mxu0 0.0
        %1682 = vmatpush1.msra.mxu0 0.0
        %1683 = vmatprep.subr.mxu0 0.0
        %1684 = vmatpush1.msra.mxu0 0.0
        %1685 = vmatprep.subr.mxu0 0.0
        %1686 = vmatpush1.msra.mxu0 0.0
        %1687 = vmatprep.subr.mxu0 0.0
        %1688 = vmatpush1.msra.mxu0 0.0
        %1689 = vmatprep.subr.mxu0 0.0
        %1690 = vmatpush1.msra.mxu0 0.0
        %1691 = vmatprep.subr.mxu0 0.0
        %1692 = vmatpush1.msra.mxu0 0.0
        %1693 = vmatprep.subr.mxu0 0.0
        %1694 = vmatpush1.msra.mxu0 0.0
        %1695 = vmatprep.subr.mxu0 0.0
        %1696 = vmatpush1.msra.mxu0 0.0
        %1697 = vmatprep.subr.mxu0 0.0
        %1698 = vmatpush1.msra.mxu0 0.0
        %1699 = vmatprep.subr.mxu0 0.0
        %1700 = vmatpush1.msra.mxu0 %v993
        %1701 = vmatprep.subr.mxu0 0.0
        %1702 = vmatpush1.msra.mxu0 %v988
        %1703 = vmatprep.subr.mxu0 0.0
        %1704 = vmatpush2.msra.mxu0 0.0
        %1705 = vmatprep.subr.mxu0 0.0
        %1706 = vmatpush2.msra.mxu0 0.0
        %1707 = vmatprep.subr.mxu0 0.0
        %1708 = vmatpush2.msra.mxu0 0.0
        %1709 = vmatprep.subr.mxu0 0.0
        %1710 = vmatpush2.msra.mxu0 0.0
        %1711 = vmatprep.subr.mxu0 0.0
        %1712 = vmatpush2.msra.mxu0 0.0
        %1713 = vmatprep.subr.mxu0 0.0
        %1714 = vmatpush2.msra.mxu0 0.0
        %1715 = vmatprep.subr.mxu0 0.0
        %1716 = vmatpush2.msra.mxu0 0.0
        %1717 = vmatprep.subr.mxu0 0.0
        %1718 = vmatpush2.msra.mxu0 0.0
        %1719 = vmatprep.subr.mxu0 0.0
        %1720 = vmatpush2.msra.mxu0 0.0
        %1721 = vmatprep.subr.mxu0 0.0
        %1722 = vmatpush2.msra.mxu0 0.0
        %1723 = vmatprep.subr.mxu0 0.0
        %1724 = vmatpush2.msra.mxu0 0.0
        %1725 = vmatprep.subr.mxu0 0.0
        %1726 = vmatpush2.msra.mxu0 0.0
        %1727 = vmatprep.subr.mxu0 0.0
        %1728 = vmatpush2.msra.mxu0 0.0
        %1729 = vmatprep.subr.mxu0 0.0
        %1730 = vmatpush2.msra.mxu0 0.0
        %1731 = vmatprep.subr.mxu0 0.0
        %1732 = vmatpush2.msra.mxu0 0.0
        %1733 = vmatprep.subr.mxu0 0.0
        %1734 = vmatpush2.msra.mxu0 0.0
        %1735 = vmatprep.mubr.f32.mxu0 0.0
        %1736 = vmatmul.mubr.f32.gmra.mxu0 %v1660
        %v1737 = vpop.f32.mrf.mxu0
        %v1738 = vadd.f32 0.0, %v1737
        %v1739 = vpop.f32.mrf.mxu0
        %1740 = vmatprep.mubr.f32.mxu0 0.0
        %1741 = vmatmul.mubr.f32.gmra.mxu0 %v1663
        %v1742 = vpop.f32.mrf.mxu0
        %v1743 = vadd.f32 0.0, %v1742
        %v1744 = vpop.f32.mrf.mxu0
        %1745 = vmatprep.mubr.f32.mxu0 0.0
        %1746 = vmatmul.mubr.f32.gmra.mxu0 %v1666
        %v1747 = vpop.f32.mrf.mxu0
        %v1748 = vadd.f32 0.0, %v1747
        %v1749 = vpop.f32.mrf.mxu0
        %1750 = vmatprep.mubr.f32.mxu0 0.0
        %1751 = vmatmul.mubr.f32.gmra.mxu0 %v1669
        %v1752 = vpop.f32.mrf.mxu0
        %v1753 = vadd.f32 0.0, %v1752
        %v1754 = vpop.f32.mrf.mxu0
        %1755 = vdwg.mxu0
        %v1757 = vsel %vm590, %v1259, 0
        %v1760 = vsel %vm590, %v1260, 0
        %v1763 = vsel %vm590, %v1261, 0
        %v1766 = vsel %vm590, %v1262, 0
        %1768 = vmatprep.subr.mxu0 0.0
        %1769 = vmatpush1.msra.mxu0 0.0
        %1770 = vmatprep.subr.mxu0 0.0
        %1771 = vmatpush1.msra.mxu0 0.0
        %1772 = vmatprep.subr.mxu0 0.0
        %1773 = vmatpush1.msra.mxu0 0.0
        %1774 = vmatprep.subr.mxu0 0.0
        %1775 = vmatpush1.msra.mxu0 0.0
        %1776 = vmatprep.subr.mxu0 0.0
        %1777 = vmatpush1.msra.mxu0 0.0
        %1778 = vmatprep.subr.mxu0 0.0
        %1779 = vmatpush1.msra.mxu0 0.0
        %1780 = vmatprep.subr.mxu0 0.0
        %1781 = vmatpush1.msra.mxu0 0.0
        %1782 = vmatprep.subr.mxu0 0.0
        %1783 = vmatpush1.msra.mxu0 0.0
        %1784 = vmatprep.subr.mxu0 0.0
        %1785 = vmatpush1.msra.mxu0 0.0
        %1786 = vmatprep.subr.mxu0 0.0
        %1787 = vmatpush1.msra.mxu0 0.0
        %1788 = vmatprep.subr.mxu0 0.0
        %1789 = vmatpush1.msra.mxu0 0.0
        %1790 = vmatprep.subr.mxu0 0.0
        %1791 = vmatpush1.msra.mxu0 0.0
        %1792 = vmatprep.subr.mxu0 0.0
        %1793 = vmatpush1.msra.mxu0 0.0
        %1794 = vmatprep.subr.mxu0 0.0
        %1795 = vmatpush1.msra.mxu0 0.0
        %1796 = vmatprep.subr.mxu0 0.0
        %1797 = vmatpush1.msra.mxu0 %v1074
        %1798 = vmatprep.subr.mxu0 0.0
        %1799 = vmatpush1.msra.mxu0 %v1069
        %1800 = vmatprep.subr.mxu0 0.0
        %1801 = vmatpush2.msra.mxu0 0.0
        %1802 = vmatprep.subr.mxu0 0.0
        %1803 = vmatpush2.msra.mxu0 0.0
        %1804 = vmatprep.subr.mxu0 0.0
        %1805 = vmatpush2.msra.mxu0 0.0
        %1806 = vmatprep.subr.mxu0 0.0
        %1807 = vmatpush2.msra.mxu0 0.0
        %1808 = vmatprep.subr.mxu0 0.0
        %1809 = vmatpush2.msra.mxu0 0.0
        %1810 = vmatprep.subr.mxu0 0.0
        %1811 = vmatpush2.msra.mxu0 0.0
        %1812 = vmatprep.subr.mxu0 0.0
        %1813 = vmatpush2.msra.mxu0 0.0
        %1814 = vmatprep.subr.mxu0 0.0
        %1815 = vmatpush2.msra.mxu0 0.0
        %1816 = vmatprep.subr.mxu0 0.0
        %1817 = vmatpush2.msra.mxu0 0.0
        %1818 = vmatprep.subr.mxu0 0.0
        %1819 = vmatpush2.msra.mxu0 0.0
        %1820 = vmatprep.subr.mxu0 0.0
        %1821 = vmatpush2.msra.mxu0 0.0
        %1822 = vmatprep.subr.mxu0 0.0
        %1823 = vmatpush2.msra.mxu0 0.0
        %1824 = vmatprep.subr.mxu0 0.0
        %1825 = vmatpush2.msra.mxu0 0.0
        %1826 = vmatprep.subr.mxu0 0.0
        %1827 = vmatpush2.msra.mxu0 0.0
        %1828 = vmatprep.subr.mxu0 0.0
        %1829 = vmatpush2.msra.mxu0 0.0
        %1830 = vmatprep.subr.mxu0 0.0
        %1831 = vmatpush2.msra.mxu0 0.0
        %1832 = vmatprep.mubr.f32.mxu0 0.0
        %1833 = vmatmul.mubr.f32.gmra.mxu0 %v1757
        %v1834 = vpop.f32.mrf.mxu0
        %v1835 = vadd.f32 0.0, %v1834
        %v1836 = vpop.f32.mrf.mxu0
        %1837 = vmatprep.mubr.f32.mxu0 0.0
        %1838 = vmatmul.mubr.f32.gmra.mxu0 %v1760
        %v1839 = vpop.f32.mrf.mxu0
        %v1840 = vadd.f32 0.0, %v1839
        %v1841 = vpop.f32.mrf.mxu0
        %1842 = vmatprep.mubr.f32.mxu0 0.0
        %1843 = vmatmul.mubr.f32.gmra.mxu0 %v1763
        %v1844 = vpop.f32.mrf.mxu0
        %v1845 = vadd.f32 0.0, %v1844
        %v1846 = vpop.f32.mrf.mxu0
        %1847 = vmatprep.mubr.f32.mxu0 0.0
        %1848 = vmatmul.mubr.f32.gmra.mxu0 %v1766
        %v1849 = vpop.f32.mrf.mxu0
        %v1850 = vadd.f32 0.0, %v1849
        %v1851 = vpop.f32.mrf.mxu0
        %1852 = vdwg.mxu0
        %v1854 = vsel %vm590, %v1263, 0
        %v1857 = vsel %vm590, %v1264, 0
        %v1860 = vsel %vm590, %v1265, 0
        %v1863 = vsel %vm590, %v1266, 0
        %1865 = vmatprep.subr.mxu0 0.0
        %1866 = vmatpush1.msra.mxu0 0.0
        %1867 = vmatprep.subr.mxu0 0.0
        %1868 = vmatpush1.msra.mxu0 0.0
        %1869 = vmatprep.subr.mxu0 0.0
        %1870 = vmatpush1.msra.mxu0 0.0
        %1871 = vmatprep.subr.mxu0 0.0
        %1872 = vmatpush1.msra.mxu0 0.0
        %1873 = vmatprep.subr.mxu0 0.0
        %1874 = vmatpush1.msra.mxu0 0.0
        %1875 = vmatprep.subr.mxu0 0.0
        %1876 = vmatpush1.msra.mxu0 0.0
        %1877 = vmatprep.subr.mxu0 0.0
        %1878 = vmatpush1.msra.mxu0 0.0
        %1879 = vmatprep.subr.mxu0 0.0
        %1880 = vmatpush1.msra.mxu0 0.0
        %1881 = vmatprep.subr.mxu0 0.0
        %1882 = vmatpush1.msra.mxu0 0.0
        %1883 = vmatprep.subr.mxu0 0.0
        %1884 = vmatpush1.msra.mxu0 0.0
        %1885 = vmatprep.subr.mxu0 0.0
        %1886 = vmatpush1.msra.mxu0 0.0
        %1887 = vmatprep.subr.mxu0 0.0
        %1888 = vmatpush1.msra.mxu0 0.0
        %1889 = vmatprep.subr.mxu0 0.0
        %1890 = vmatpush1.msra.mxu0 0.0
        %1891 = vmatprep.subr.mxu0 0.0
        %1892 = vmatpush1.msra.mxu0 0.0
        %1893 = vmatprep.subr.mxu0 0.0
        %1894 = vmatpush1.msra.mxu0 %v1155
        %1895 = vmatprep.subr.mxu0 0.0
        %1896 = vmatpush1.msra.mxu0 %v1150
        %1897 = vmatprep.subr.mxu0 0.0
        %1898 = vmatpush2.msra.mxu0 0.0
        %1899 = vmatprep.subr.mxu0 0.0
        %1900 = vmatpush2.msra.mxu0 0.0
        %1901 = vmatprep.subr.mxu0 0.0
        %1902 = vmatpush2.msra.mxu0 0.0
        %1903 = vmatprep.subr.mxu0 0.0
        %1904 = vmatpush2.msra.mxu0 0.0
        %1905 = vmatprep.subr.mxu0 0.0
        %1906 = vmatpush2.msra.mxu0 0.0
        %1907 = vmatprep.subr.mxu0 0.0
        %1908 = vmatpush2.msra.mxu0 0.0
        %1909 = vmatprep.subr.mxu0 0.0
        %1910 = vmatpush2.msra.mxu0 0.0
        %1911 = vmatprep.subr.mxu0 0.0
        %1912 = vmatpush2.msra.mxu0 0.0
        %1913 = vmatprep.subr.mxu0 0.0
        %1914 = vmatpush2.msra.mxu0 0.0
        %1915 = vmatprep.subr.mxu0 0.0
        %1916 = vmatpush2.msra.mxu0 0.0
        %1917 = vmatprep.subr.mxu0 0.0
        %1918 = vmatpush2.msra.mxu0 0.0
        %1919 = vmatprep.subr.mxu0 0.0
        %1920 = vmatpush2.msra.mxu0 0.0
        %1921 = vmatprep.subr.mxu0 0.0
        %1922 = vmatpush2.msra.mxu0 0.0
        %1923 = vmatprep.subr.mxu0 0.0
        %1924 = vmatpush2.msra.mxu0 0.0
        %1925 = vmatprep.subr.mxu0 0.0
        %1926 = vmatpush2.msra.mxu0 0.0
        %1927 = vmatprep.subr.mxu0 0.0
        %1928 = vmatpush2.msra.mxu0 0.0
        %1929 = vmatprep.mubr.f32.mxu0 0.0
        %1930 = vmatmul.mubr.f32.gmra.mxu0 %v1854
        %v1931 = vpop.f32.mrf.mxu0
        %v1932 = vadd.f32 0.0, %v1931
        %v1933 = vpop.f32.mrf.mxu0
        %1934 = vmatprep.mubr.f32.mxu0 0.0
        %1935 = vmatmul.mubr.f32.gmra.mxu0 %v1857
        %v1936 = vpop.f32.mrf.mxu0
        %v1937 = vadd.f32 0.0, %v1936
        %v1938 = vpop.f32.mrf.mxu0
        %1939 = vmatprep.mubr.f32.mxu0 0.0
        %1940 = vmatmul.mubr.f32.gmra.mxu0 %v1860
        %v1941 = vpop.f32.mrf.mxu0
        %v1942 = vadd.f32 0.0, %v1941
        %v1943 = vpop.f32.mrf.mxu0
        %1944 = vmatprep.mubr.f32.mxu0 0.0
        %1945 = vmatmul.mubr.f32.gmra.mxu0 %v1863
        %v1946 = vpop.f32.mrf.mxu0
        %v1947 = vadd.f32 0.0, %v1946
        %v1948 = vpop.f32.mrf.mxu0
        %1949 = vdwg.mxu0
        %v1951 = vsel %vm590, %v1267, 0
        %v1954 = vsel %vm590, %v1268, 0
        %v1957 = vsel %vm590, %v1269, 0
        %v1960 = vsel %vm590, %v1270, 0
        %1962 = vmatprep.subr.mxu0 0.0
        %1963 = vmatpush1.msra.mxu0 0.0
        %1964 = vmatprep.subr.mxu0 0.0
        %1965 = vmatpush1.msra.mxu0 0.0
        %1966 = vmatprep.subr.mxu0 0.0
        %1967 = vmatpush1.msra.mxu0 0.0
        %1968 = vmatprep.subr.mxu0 0.0
        %1969 = vmatpush1.msra.mxu0 0.0
        %1970 = vmatprep.subr.mxu0 0.0
        %1971 = vmatpush1.msra.mxu0 0.0
        %1972 = vmatprep.subr.mxu0 0.0
        %1973 = vmatpush1.msra.mxu0 0.0
        %1974 = vmatprep.subr.mxu0 0.0
        %1975 = vmatpush1.msra.mxu0 0.0
        %1976 = vmatprep.subr.mxu0 0.0
        %1977 = vmatpush1.msra.mxu0 0.0
        %1978 = vmatprep.subr.mxu0 0.0
        %1979 = vmatpush1.msra.mxu0 0.0
        %1980 = vmatprep.subr.mxu0 0.0
        %1981 = vmatpush1.msra.mxu0 0.0
        %1982 = vmatprep.subr.mxu0 0.0
        %1983 = vmatpush1.msra.mxu0 0.0
        %1984 = vmatprep.subr.mxu0 0.0
        %1985 = vmatpush1.msra.mxu0 0.0
        %1986 = vmatprep.subr.mxu0 0.0
        %1987 = vmatpush1.msra.mxu0 0.0
        %1988 = vmatprep.subr.mxu0 0.0
        %1989 = vmatpush1.msra.mxu0 0.0
        %1990 = vmatprep.subr.mxu0 0.0
        %1991 = vmatpush1.msra.mxu0 %v1236
        %1992 = vmatprep.subr.mxu0 0.0
        %1993 = vmatpush1.msra.mxu0 %v1231
        %1994 = vmatprep.subr.mxu0 0.0
        %1995 = vmatpush2.msra.mxu0 0.0
        %1996 = vmatprep.subr.mxu0 0.0
        %1997 = vmatpush2.msra.mxu0 0.0
        %1998 = vmatprep.subr.mxu0 0.0
        %1999 = vmatpush2.msra.mxu0 0.0
        %2000 = vmatprep.subr.mxu0 0.0
        %2001 = vmatpush2.msra.mxu0 0.0
        %2002 = vmatprep.subr.mxu0 0.0
        %2003 = vmatpush2.msra.mxu0 0.0
        %2004 = vmatprep.subr.mxu0 0.0
        %2005 = vmatpush2.msra.mxu0 0.0
        %2006 = vmatprep.subr.mxu0 0.0
        %2007 = vmatpush2.msra.mxu0 0.0
        %2008 = vmatprep.subr.mxu0 0.0
        %2009 = vmatpush2.msra.mxu0 0.0
        %2010 = vmatprep.subr.mxu0 0.0
        %2011 = vmatpush2.msra.mxu0 0.0
        %2012 = vmatprep.subr.mxu0 0.0
        %2013 = vmatpush2.msra.mxu0 0.0
        %2014 = vmatprep.subr.mxu0 0.0
        %2015 = vmatpush2.msra.mxu0 0.0
        %2016 = vmatprep.subr.mxu0 0.0
        %2017 = vmatpush2.msra.mxu0 0.0
        %2018 = vmatprep.subr.mxu0 0.0
        %2019 = vmatpush2.msra.mxu0 0.0
        %2020 = vmatprep.subr.mxu0 0.0
        %2021 = vmatpush2.msra.mxu0 0.0
        %2022 = vmatprep.subr.mxu0 0.0
        %2023 = vmatpush2.msra.mxu0 0.0
        %2024 = vmatprep.subr.mxu0 0.0
        %2025 = vmatpush2.msra.mxu0 0.0
        %2026 = vmatprep.mubr.f32.mxu0 0.0
        %2027 = vmatmul.mubr.f32.gmra.mxu0 %v1951
        %v2028 = vpop.f32.mrf.mxu0
        %v2029 = vadd.f32 0.0, %v2028
        %v2030 = vpop.f32.mrf.mxu0
        %2031 = vmatprep.mubr.f32.mxu0 0.0
        %2032 = vmatmul.mubr.f32.gmra.mxu0 %v1954
        %v2033 = vpop.f32.mrf.mxu0
        %v2034 = vadd.f32 0.0, %v2033
        %v2035 = vpop.f32.mrf.mxu0
        %2036 = vmatprep.mubr.f32.mxu0 0.0
        %2037 = vmatmul.mubr.f32.gmra.mxu0 %v1957
        %v2038 = vpop.f32.mrf.mxu0
        %v2039 = vadd.f32 0.0, %v2038
        %v2040 = vpop.f32.mrf.mxu0
        %2041 = vmatprep.mubr.f32.mxu0 0.0
        %2042 = vmatmul.mubr.f32.gmra.mxu0 %v1960
        %v2043 = vpop.f32.mrf.mxu0
        %v2044 = vadd.f32 0.0, %v2043
        %v2045 = vpop.f32.mrf.mxu0
        %2046 = vdwg.mxu0
        %v2047 = vmax.f32 %v1350, 0.0
        %v2048 = vmax.f32 %v1355, 0.0
        %v2049 = vmax.f32 %v1360, 0.0
        %v2050 = vmax.f32 %v1365, 0.0
        %v2051 = vmax.f32 %v1447, 0.0
        %v2052 = vmax.f32 %v1452, 0.0
        %v2053 = vmax.f32 %v1457, 0.0
        %v2054 = vmax.f32 %v1462, 0.0
        %v2055 = vmax.f32 %v1544, 0.0
        %v2056 = vmax.f32 %v1549, 0.0
        %v2057 = vmax.f32 %v1554, 0.0
        %v2058 = vmax.f32 %v1559, 0.0
        %v2059 = vmax.f32 %v1641, 0.0
        %v2060 = vmax.f32 %v1646, 0.0
        %v2061 = vmax.f32 %v1651, 0.0
        %v2062 = vmax.f32 %v1656, 0.0
        %v2063 = vmax.f32 %v1738, 0.0
        %v2064 = vmax.f32 %v1743, 0.0
        %v2065 = vmax.f32 %v1748, 0.0
        %v2066 = vmax.f32 %v1753, 0.0
        %v2067 = vmax.f32 %v1835, 0.0
        %v2068 = vmax.f32 %v1840, 0.0
        %v2069 = vmax.f32 %v1845, 0.0
        %v2070 = vmax.f32 %v1850, 0.0
        %v2071 = vmax.f32 %v1932, 0.0
        %v2072 = vmax.f32 %v1937, 0.0
        %v2073 = vmax.f32 %v1942, 0.0
        %v2074 = vmax.f32 %v1947, 0.0
        %v2075 = vmax.f32 %v2029, 0.0
        %v2076 = vmax.f32 %v2034, 0.0
        %v2077 = vmax.f32 %v2039, 0.0
        %v2078 = vmax.f32 %v2044, 0.0
        %v2079 = vld [vmem:[%s365] sm:$0xff]
        %v2080 = vld [vmem:[%s365 + $0x8] sm:$0xff]
        %v2081 = vld [vmem:[%s365 + $0x10] sm:$0xff]
        %v2082 = vld [vmem:[%s365 + $0x18] sm:$0xff]
        %v2083 = vld [vmem:[%s365 + $0x20] sm:$0xff]
        %v2084 = vld [vmem:[%s365 + $0x28] sm:$0xff]
        %v2085 = vld [vmem:[%s365 + $0x30] sm:$0xff]
        %v2086 = vld [vmem:[%s365 + $0x38] sm:$0xff]
        %v2087 = vld [vmem:[%s365 + $0x40] sm:$0xff]
        %v2088 = vld [vmem:[%s365 + $0x48] sm:$0xff]
        %v2089 = vld [vmem:[%s365 + $0x50] sm:$0xff]
        %v2090 = vld [vmem:[%s365 + $0x58] sm:$0xff]
        %v2091 = vld [vmem:[%s365 + $0x60] sm:$0xff]
        %v2092 = vld [vmem:[%s365 + $0x68] sm:$0xff]
        %v2093 = vld [vmem:[%s365 + $0x70] sm:$0xff]
        %v2094 = vld [vmem:[%s365 + $0x78] sm:$0xff]
        %v2095 = vld [vmem:[%s365 + $0x80] sm:$0xff]
        %v2096 = vld [vmem:[%s365 + $0x88] sm:$0xff]
        %v2097 = vld [vmem:[%s365 + $0x90] sm:$0xff]
        %v2098 = vld [vmem:[%s365 + $0x98] sm:$0xff]
        %v2099 = vld [vmem:[%s365 + $0xa0] sm:$0xff]
        %v2100 = vld [vmem:[%s365 + $0xa8] sm:$0xff]
        %v2101 = vld [vmem:[%s365 + $0xb0] sm:$0xff]
        %v2102 = vld [vmem:[%s365 + $0xb8] sm:$0xff]
        %v2103 = vld [vmem:[%s365 + $0xc0] sm:$0xff]
        %v2104 = vld [vmem:[%s365 + $0xc8] sm:$0xff]
        %v2105 = vld [vmem:[%s365 + $0xd0] sm:$0xff]
        %v2106 = vld [vmem:[%s365 + $0xd8] sm:$0xff]
        %v2107 = vld [vmem:[%s365 + $0xe0] sm:$0xff]
        %v2108 = vld [vmem:[%s365 + $0xe8] sm:$0xff]
        %v2109 = vld [vmem:[%s365 + $0xf0] sm:$0xff]
        %v2110 = vld [vmem:[%s365 + $0xf8] sm:$0xff]
        %v2111 = vadd.f32 %v2047, %v2079
        %v2112 = vadd.f32 %v2048, %v2080
        %v2113 = vadd.f32 %v2049, %v2081
        %v2114 = vadd.f32 %v2050, %v2082
        %v2115 = vadd.f32 %v2051, %v2083
        %v2116 = vadd.f32 %v2052, %v2084
        %v2117 = vadd.f32 %v2053, %v2085
        %v2118 = vadd.f32 %v2054, %v2086
        %v2119 = vadd.f32 %v2055, %v2087
        %v2120 = vadd.f32 %v2056, %v2088
        %v2121 = vadd.f32 %v2057, %v2089
        %v2122 = vadd.f32 %v2058, %v2090
        %v2123 = vadd.f32 %v2059, %v2091
        %v2124 = vadd.f32 %v2060, %v2092
        %v2125 = vadd.f32 %v2061, %v2093
        %v2126 = vadd.f32 %v2062, %v2094
        %v2127 = vadd.f32 %v2063, %v2095
        %v2128 = vadd.f32 %v2064, %v2096
        %v2129 = vadd.f32 %v2065, %v2097
        %v2130 = vadd.f32 %v2066, %v2098
        %v2131 = vadd.f32 %v2067, %v2099
        %v2132 = vadd.f32 %v2068, %v2100
        %v2133 = vadd.f32 %v2069, %v2101
        %v2134 = vadd.f32 %v2070, %v2102
        %v2135 = vadd.f32 %v2071, %v2103
        %v2136 = vadd.f32 %v2072, %v2104
        %v2137 = vadd.f32 %v2073, %v2105
        %v2138 = vadd.f32 %v2074, %v2106
        %v2139 = vadd.f32 %v2075, %v2107
        %v2140 = vadd.f32 %v2076, %v2108
        %v2141 = vadd.f32 %v2077, %v2109
        %v2142 = vadd.f32 %v2078, %v2110
        %vm2143 = vcmask 261120
        %2144 = vst.msk [vmem:[%s360] sm:$0xff] %vm2143, %v2111
        %2145 = vst.msk [vmem:[%s360 + $0x8] sm:$0xff] %vm2143, %v2112
        %2146 = vst.msk [vmem:[%s360 + $0x10] sm:$0xff] %vm2143, %v2113
        %2147 = vst.msk [vmem:[%s360 + $0x18] sm:$0xff] %vm2143, %v2114
        %2148 = vst.msk [vmem:[%s360 + $0x20] sm:$0xff] %vm2143, %v2115
        %2149 = vst.msk [vmem:[%s360 + $0x28] sm:$0xff] %vm2143, %v2116
        %2150 = vst.msk [vmem:[%s360 + $0x30] sm:$0xff] %vm2143, %v2117
        %2151 = vst.msk [vmem:[%s360 + $0x38] sm:$0xff] %vm2143, %v2118
        %2152 = vst.msk [vmem:[%s360 + $0x40] sm:$0xff] %vm2143, %v2119
        %2153 = vst.msk [vmem:[%s360 + $0x48] sm:$0xff] %vm2143, %v2120
        %2154 = vst.msk [vmem:[%s360 + $0x50] sm:$0xff] %vm2143, %v2121
        %2155 = vst.msk [vmem:[%s360 + $0x58] sm:$0xff] %vm2143, %v2122
        %2156 = vst.msk [vmem:[%s360 + $0x60] sm:$0xff] %vm2143, %v2123
        %2157 = vst.msk [vmem:[%s360 + $0x68] sm:$0xff] %vm2143, %v2124
        %2158 = vst.msk [vmem:[%s360 + $0x70] sm:$0xff] %vm2143, %v2125
        %2159 = vst.msk [vmem:[%s360 + $0x78] sm:$0xff] %vm2143, %v2126
        %2160 = vst.msk [vmem:[%s360 + $0x80] sm:$0xff] %vm2143, %v2127
        %2161 = vst.msk [vmem:[%s360 + $0x88] sm:$0xff] %vm2143, %v2128
        %2162 = vst.msk [vmem:[%s360 + $0x90] sm:$0xff] %vm2143, %v2129
        %2163 = vst.msk [vmem:[%s360 + $0x98] sm:$0xff] %vm2143, %v2130
        %2164 = vst.msk [vmem:[%s360 + $0xa0] sm:$0xff] %vm2143, %v2131
        %2165 = vst.msk [vmem:[%s360 + $0xa8] sm:$0xff] %vm2143, %v2132
        %2166 = vst.msk [vmem:[%s360 + $0xb0] sm:$0xff] %vm2143, %v2133
        %2167 = vst.msk [vmem:[%s360 + $0xb8] sm:$0xff] %vm2143, %v2134
        %2168 = vst.msk [vmem:[%s360 + $0xc0] sm:$0xff] %vm2143, %v2135
        %2169 = vst.msk [vmem:[%s360 + $0xc8] sm:$0xff] %vm2143, %v2136
        %2170 = vst.msk [vmem:[%s360 + $0xd0] sm:$0xff] %vm2143, %v2137
        %2171 = vst.msk [vmem:[%s360 + $0xd8] sm:$0xff] %vm2143, %v2138
        %2172 = vst.msk [vmem:[%s360 + $0xe0] sm:$0xff] %vm2143, %v2139
        %2173 = vst.msk [vmem:[%s360 + $0xe8] sm:$0xff] %vm2143, %v2140
        %2174 = vst.msk [vmem:[%s360 + $0xf0] sm:$0xff] %vm2143, %v2141
        %2175 = vst.msk [vmem:[%s360 + $0xf8] sm:$0xff] %vm2143, %v2142
        %s2176 = sand.u32 %s164, 1
        %s2177 = scalar_lea.sflag [#allocation4], %s2176
        %s2178 = sand.u32 %s164, 1
        %s2179 = smul.addr %s2178, 256
        %s2180 = scalar_lea.vmem [#allocation3], %s2179
        // Predicated region
        $region83: #{decoder_forward.3} parent=77 // pred_check
          %p2181 = pneg %p174
        $region84: #{decoder_forward.3} parent=77 // pred_check_branch
          %2183 = sbr.rel (%p2181) target = $region86
        $region85: #{decoder_forward.3} parent=77 // pred_region
          %s2185 = ssub.s32 4096, 4096
          %2186 = vsyncadd %s2177, %s2185
          %s2187 = smul.addr %s20, 32
          %s2188 = smul.addr %s2187, 128
          %s2189 = scalar_lea.hbm %s6, %s2188
          %s2190 = sshll.u32 %s2180, 4
          %s2191 = int_to_ptr.vmem [resolvable:$true] %s2190
          %2196 = dma.vmem_to_hbm [thread:$0]  %s2191, 4096, %s2189, %s2177, 128, 128, 8
        $region86: #{decoder_forward.3} parent=77 // pred_fallthru
          _
      $region78: #{decoder_forward.3} parent=5 // pred_fallthru
        _
      %p2197 = scmp.le.s32.totalorder 2, %s15
      // Predicated region
      $region87: #{decoder_forward.3} parent=5 // pred_check
        %p2198 = pneg %p2197
      $region88: #{decoder_forward.3} parent=5 // pred_check_branch
        %2200 = sbr.rel (%p2198) target = $region90
      $region89: #{decoder_forward.3} parent=5 // pred_region
        %s2201 = ssub.s32 %s15, 2
        // Predicated region
        $region91: #{decoder_forward.3} parent=89 // pred_check
          %p2202 = pneg %p180
        $region92: #{decoder_forward.3} parent=89 // pred_check_branch
          %2204 = sbr.rel (%p2202) target = $region94
        $region93: #{decoder_forward.3} parent=89 // pred_region
          %s2205 = sand.u32 %s165, 1
          %s2206 = scalar_lea.sflag [#allocation4], %s2205
          %s2207 = sand.u32 %s165, 1
          %s2208 = smul.addr %s2207, 256
          %s2209 = scalar_lea.vmem [#allocation3], %s2208
          %2210 = dma.done %s2206, 4096
        $region94: #{decoder_forward.3} parent=89 // pred_fallthru
          _
      $region90: #{decoder_forward.3} parent=5 // pred_fallthru
        _
    $region6: #{decoder_forward.3} parent=1 // loop_footer
      %s19 = sadd.s32 1, %s15
    $region7: #{decoder_forward.3} parent=1 // loop_footer_branch
      %14 = sbr.rel target = $region3
    $region8: #{decoder_forward.3} parent=1 // loop_exit
      _
    %2211 = vsyncpa [#allocation4], 1
    %s2212 = scalar_lea.sflag [#allocation4], 1
    %2213 = vsyncpa %s2212, 1

</llo_original>
